<compile_context>
chip_gen: v6e
topology: v6e:2x2x1
jax: 0.10.0
libtpu: 0.0.40
codegen_flags: <defaults>
</compile_context>

<pallas_src>
from functools import partial

import jax
import jax.numpy as jnp
from jax import lax
from jax.experimental import pallas as pl
from jax.experimental.pallas import tpu as pltpu

# Module hyper-parameters (from the PyTorch script)
ADD_VALUE = 0.5
MULTIPLY_VALUE = 2.0
IN_CHANNELS = 32
OUT_CHANNELS = 16
KERNEL_SIZE = 4
STRIDE = 2


def _gelu_approx(x):
    # matches the CUDA kernel's tanh-approx GELU
    return 0.5 * x * (1.0 + jnp.tanh(0.7978845608 * (x + 0.044715 * x * x * x)))


def _fused_subpixel_kernel(x_ref, w_ref, b_ref, o_ref, *, Hq, Wq, c_in, c_out, half_mul):
    # x_ref: (1, H+2, W+2, Cin)  NHWC input with a 1-pixel zero halo
    # w_ref: (4*Cin, 4*Cout)     rows = (dh, dw, ci); cols = (ph, pw, co)
    # b_ref: (1, 4*Cout)         bias[co] + add_value, tiled over (ph, pw)
    # o_ref: (1, Hq*Wq, 4*Cout)  rows = (qh, qw); cols = (ph, pw, co)
    x = x_ref[0]                                   # (H+2, W+2, Cin)

    # im2col over the 2x2 sub-pixel taps -> single 128-deep contraction
    patch = jnp.concatenate(
        [x[dh:dh + Hq, dw:dw + Wq, :] for dh in (0, 1) for dw in (0, 1)],
        axis=-1)                                   # (Hq, Wq, 4*Cin)
    patch = patch.reshape(Hq * Wq, 4 * c_in)       # (Hq*Wq, 128)

    acc = jnp.dot(patch, w_ref[...], preferred_element_type=jnp.float32)  # (Hq*Wq, 64)

    # fused epilogue: min(conv + bias + add_value, 0) -> gelu -> * multiply_value
    t = jnp.minimum(acc + b_ref[...], 0.0)
    y = (half_mul * t) * (1.0 + jnp.tanh(0.7978845608 * (t + 0.044715 * t * t * t)))

    o_ref[0] = y.astype(o_ref.dtype)


def fused_conv_transpose(x_nchw, weight, bias, *,
                         stride=STRIDE,
                         add_value=ADD_VALUE,
                         multiply_value=MULTIPLY_VALUE):
    """x_nchw: (N, Cin, H, W); weight: (Cin, Cout, K, K) [PyTorch ConvTranspose2d layout]."""
    N, c_in, H, W = x_nchw.shape
    _, c_out, K, _ = weight.shape
    assert stride == 2 and K == 4, "sub-pixel decomposition specialized to stride=2, K=4"

    Hq, Wq = H + 1, W + 1          # per-parity output extent
    h_out, w_out = 2 * Hq, 2 * Wq  # = (H-1)*stride + K

    # NHWC + 1-pixel zero halo (the only wrapper-side prep of the activations)
    x = jnp.transpose(x_nchw, (0, 2, 3, 1)).astype(jnp.float32)
    x_pad = jnp.pad(x, ((0, 0), (1, 1), (1, 1), (0, 0)))

    # Weight -> (dh, dw, ci) x (ph, pw, co) matrix.
    #   out[2qh+ph, 2qw+pw, co] = sum_{dh,dw,ci} xpad[qh+dh, qw+dw, ci]
    #                                           * weight[ci, co, ph+2(1-dh), pw+2(1-dw)]
    w_r = weight.astype(jnp.float32).reshape(c_in, c_out, 2, 2, 2, 2)  # (ci, co, a, ph, b, pw)
    w_f = w_r[:, :, ::-1, :, ::-1, :]                                  # a -> dh, b -> dw
    w_mat = jnp.transpose(w_f, (2, 4, 0, 3, 5, 1)).reshape(4 * c_in, 4 * c_out)

    # bias + add_value folded, tiled over the 4 (ph, pw) column groups
    b_eff = (jnp.tile(bias.astype(jnp.float32), 4)
             + jnp.float32(add_value)).reshape(1, 4 * c_out)

    kernel = partial(_fused_subpixel_kernel, Hq=Hq, Wq=Wq, c_in=c_in, c_out=c_out,
                     half_mul=0.5 * multiply_value)

    out_k = pl.pallas_call(
        kernel,
        out_shape=jax.ShapeDtypeStruct((N, Hq * Wq, 4 * c_out), jnp.float32),
        grid=(N,),
        in_specs=[
            pl.BlockSpec((1, H + 2, W + 2, c_in), lambda n: (n, 0, 0, 0)),
            pl.BlockSpec((4 * c_in, 4 * c_out), lambda n: (0, 0)),
            pl.BlockSpec((1, 4 * c_out), lambda n: (0, 0)),
        ],
        out_specs=pl.BlockSpec((1, Hq * Wq, 4 * c_out), lambda n: (n, 0, 0)),
        compiler_params=pltpu.CompilerParams(dimension_semantics=("parallel",)),
    )(x_pad, w_mat, b_eff)

    # untangle parities: (n, qh, qw, ph, pw, co) -> NCHW with oh=2qh+ph, ow=2qw+pw
    out = out_k.reshape(N, Hq, Wq, 2, 2, c_out)
    out = jnp.transpose(out, (0, 5, 1, 3, 2, 4)).reshape(N, c_out, h_out, w_out)
    return out


def _reference(x_nchw, weight, bias):
    """Pure-JAX reference for the full forward pass (for verification)."""
    K = weight.shape[2]
    w_oihw_flip = jnp.transpose(weight[:, :, ::-1, ::-1], (1, 0, 2, 3))  # (Cout, Cin, kh, kw)
    y = lax.conv_general_dilated(
        x_nchw.astype(jnp.float32), w_oihw_flip.astype(jnp.float32),
        window_strides=(1, 1),
        padding=((K - 1, K - 1), (K - 1, K - 1)),
        lhs_dilation=(STRIDE, STRIDE),
        dimension_numbers=("NCHW", "OIHW", "NCHW"))
    y = y + bias.reshape(1, -1, 1, 1)
    t = jnp.minimum(y + ADD_VALUE, 0.0)
    return _gelu_approx(t) * MULTIPLY_VALUE


if __name__ == "__main__":
    key = jax.random.PRNGKey(0)
    kx, kw, kb = jax.random.split(key, 3)

    # small, module-consistent shapes: batch=2, Cin=32, spatial 8x8
    N, H, W = 2, 8, 8
    x = jax.random.normal(kx, (N, IN_CHANNELS, H, W), dtype=jnp.float32)

    # deterministic parameter init (ConvTranspose2d weight: (Cin, Cout, K, K))
    fan = IN_CHANNELS * KERNEL_SIZE * KERNEL_SIZE
    bound = 1.0 / jnp.sqrt(jnp.float32(fan))
    weight = jax.random.uniform(kw, (IN_CHANNELS, OUT_CHANNELS, KERNEL_SIZE, KERNEL_SIZE),
                                dtype=jnp.float32, minval=-bound, maxval=bound)
    bias = jax.random.uniform(kb, (OUT_CHANNELS,), dtype=jnp.float32,
                              minval=-bound, maxval=bound)

    out = jax.block_until_ready(fused_conv_transpose(x, weight, bias))
    ref = jax.block_until_ready(_reference(x, weight, bias))

    assert out.shape == ref.shape, (out.shape, ref.shape)
    assert jnp.allclose(out, ref, atol=1e-4, rtol=1e-4), float(jnp.max(jnp.abs(out - ref)))

    print("KERNEL_OK")
</pallas_src>

<mosaic_0001>
module attributes {stable_mosaic.version = 11 : i64} {
  func.func @_fused_subpixel_kernel(%arg0: i32, %arg1: memref<1x10x10x32xf32, #tpu.memory_space<vmem>>, %arg2: memref<128x64xf32, #tpu.memory_space<vmem>>, %arg3: memref<1x64xf32, #tpu.memory_space<vmem>>, %arg4: memref<1x81x64xf32, #tpu.memory_space<vmem>>) attributes {dimension_semantics = [#tpu.dimension_semantics<parallel>], iteration_bounds = array<i64: 2>, scalar_prefetch = 0 : i64, scratch_operands = 0 : i64, tpu.core_type = #tpu.core_type<tc>, window_params = [{transform_indices = @transform_0, window_bounds = array<i64: 1, 10, 10, 32>}, {pipeline_mode = #tpu.pipeline_mode<synchronous>, transform_indices = @transform_1, window_bounds = array<i64: 128, 64>}, {pipeline_mode = #tpu.pipeline_mode<synchronous>, transform_indices = @transform_2, window_bounds = array<i64: 1, 64>}, {transform_indices = @transform_3, window_bounds = array<i64: 1, 81, 64>}]} {
    %c0 = arith.constant 0 : index
    %c0_0 = arith.constant 0 : index
    %c0_1 = arith.constant 0 : index
    %c0_2 = arith.constant 0 : index
    %0 = vector.load %arg1[%c0, %c0_0, %c0_1, %c0_2] : memref<1x10x10x32xf32, #tpu.memory_space<vmem>>, vector<1x10x10x32xf32>
    %1 = vector.shape_cast %0 : vector<1x10x10x32xf32> to vector<10x10x32xf32>
    %2 = vector.extract_strided_slice %1 {offsets = [0, 0, 0], sizes = [9, 9, 32], strides = [1, 1, 1]} : vector<10x10x32xf32> to vector<9x9x32xf32>
    %3 = vector.extract_strided_slice %1 {offsets = [0, 1, 0], sizes = [9, 9, 32], strides = [1, 1, 1]} : vector<10x10x32xf32> to vector<9x9x32xf32>
    %4 = vector.extract_strided_slice %1 {offsets = [1, 0, 0], sizes = [9, 9, 32], strides = [1, 1, 1]} : vector<10x10x32xf32> to vector<9x9x32xf32>
    %5 = vector.extract_strided_slice %1 {offsets = [1, 1, 0], sizes = [9, 9, 32], strides = [1, 1, 1]} : vector<10x10x32xf32> to vector<9x9x32xf32>
    %6 = tpu.concatenate %2, %3, %4, %5 in 2 : vector<9x9x32xf32>, vector<9x9x32xf32>, vector<9x9x32xf32>, vector<9x9x32xf32> -> vector<9x9x128xf32>
    %7 = vector.shape_cast %6 : vector<9x9x128xf32> to vector<81x128xf32>
    %c0_3 = arith.constant 0 : index
    %c0_4 = arith.constant 0 : index
    %8 = vector.load %arg2[%c0_3, %c0_4] : memref<128x64xf32, #tpu.memory_space<vmem>>, vector<128x64xf32>
    %cst = arith.constant dense<0.000000e+00> : vector<81x64xf32>
    %9 = tpu.matmul %7, %8, %cst {dimension_numbers = #tpu.dot_dimension_numbers<[1], [0], [0], [1], [0, 0, 1, 1], [], []>} : vector<81x128xf32>, vector<128x64xf32>, vector<81x64xf32> -> vector<81x64xf32>
    %c0_5 = arith.constant 0 : index
    %c0_6 = arith.constant 0 : index
    %10 = vector.load %arg3[%c0_5, %c0_6] : memref<1x64xf32, #tpu.memory_space<vmem>>, vector<1x64xf32>
    %11 = vector.broadcast %10 : vector<1x64xf32> to vector<81x64xf32>
    %12 = arith.addf %9, %11 : vector<81x64xf32>
    %cst_7 = arith.constant 0.000000e+00 : f32
    %13 = vector.broadcast %cst_7 : f32 to vector<81x64xf32>
    %14 = arith.minimumf %12, %13 : vector<81x64xf32>
    %cst_8 = arith.constant 1.000000e+00 : f32
    %15 = vector.broadcast %cst_8 : f32 to vector<81x64xf32>
    %16 = arith.mulf %15, %14 : vector<81x64xf32>
    %cst_9 = arith.constant 4.471500e-02 : f32
    %17 = vector.broadcast %cst_9 : f32 to vector<81x64xf32>
    %18 = arith.mulf %17, %14 : vector<81x64xf32>
    %19 = arith.mulf %18, %14 : vector<81x64xf32>
    %20 = arith.mulf %19, %14 : vector<81x64xf32>
    %21 = arith.addf %14, %20 : vector<81x64xf32>
    %cst_10 = arith.constant 0.797884583 : f32
    %22 = vector.broadcast %cst_10 : f32 to vector<81x64xf32>
    %23 = arith.mulf %22, %21 : vector<81x64xf32>
    %24 = math.tanh %23 : vector<81x64xf32>
    %cst_11 = arith.constant 1.000000e+00 : f32
    %25 = vector.broadcast %cst_11 : f32 to vector<81x64xf32>
    %26 = arith.addf %25, %24 : vector<81x64xf32>
    %27 = arith.mulf %16, %26 : vector<81x64xf32>
    %c0_12 = arith.constant 0 : index
    %c0_13 = arith.constant 0 : index
    %c0_14 = arith.constant 0 : index
    %28 = vector.load %arg4[%c0_12, %c0_13, %c0_14] : memref<1x81x64xf32, #tpu.memory_space<vmem>>, vector<1x81x64xf32>
    %29 = vector.shape_cast %28 : vector<1x81x64xf32> to vector<81x64xf32>
    %30 = vector.shape_cast %27 : vector<81x64xf32> to vector<1x81x64xf32>
    tpu.vector_store %arg4[%c0_12, %c0_13, %c0_14], %30 {strides = array<i32>} : memref<1x81x64xf32, #tpu.memory_space<vmem>>, vector<1x81x64xf32>,
    return
  }
  func.func @transform_0(%arg0: i32) -> (i32, i32, i32, i32) {
    %c0_i32 = arith.constant 0 : i32
    %c0_i32_0 = arith.constant 0 : i32
    %c0_i32_1 = arith.constant 0 : i32
    %c0_i32_2 = arith.constant 0 : i32
    return %arg0, %c0_i32, %c0_i32_0, %c0_i32_1 : i32, i32, i32, i32
  }
  func.func @transform_1(%arg0: i32) -> (i32, i32) {
    %c0_i32 = arith.constant 0 : i32
    %c0_i32_0 = arith.constant 0 : i32
    %c0_i32_1 = arith.constant 0 : i32
    return %c0_i32, %c0_i32_0 : i32, i32
  }
  func.func @transform_2(%arg0: i32) -> (i32, i32) {
    %c0_i32 = arith.constant 0 : i32
    %c0_i32_0 = arith.constant 0 : i32
    %c0_i32_1 = arith.constant 0 : i32
    return %c0_i32, %c0_i32_0 : i32, i32
  }
  func.func @transform_3(%arg0: i32) -> (i32, i32, i32) {
    %c0_i32 = arith.constant 0 : i32
    %c0_i32_0 = arith.constant 0 : i32
    %c0_i32_1 = arith.constant 0 : i32
    return %arg0, %c0_i32, %c0_i32_0 : i32, i32, i32
  }
}

</mosaic_0001>

<llo_original>
// kernel: tpu_custom_call.1
$region0: #{tpu_custom_call.1}
  #allocation0 [shape = 'u32[]', space=smem, size = 0x4, offset = 0x4, fixed_abs, tag = 'smem constant byte address 0x4 - core index']
  #allocation1 [shape = 'u32[144,128]{1,0:T(1,128)}', space=vmem, size = 0x12000, scoped, tag = 'internal scratch']
  %s0 = inlined_call_operand.vmem [shape: f32[2,10,10,32], index: 0, kind: input, shape index: {}]
  %s1 = inlined_call_operand.vmem [shape: f32[128,64], index: 1, kind: input, shape index: {}]
  %s2 = inlined_call_operand.vmem [shape: f32[1,64], index: 2, kind: input, shape index: {}]
  %s3 = inlined_call_operand.vmem [shape: f32[2,81,64], index: 3, kind: output, shape index: {}]
  %s4 = sld [smem:[#allocation0]]
  $region45: #{tpu_custom_call.1} parent=0
    _
  %s6 = ssub.s32 1, %s4
  %s7 = scalar_select 0, %s6, %s4
  loop: start=0, step=1, limit=4
  $region2: #{tpu_custom_call.1} parent=0 // loop_pre_header
    _
  $region3: #{tpu_custom_call.1} parent=0 // loop_header
    %s9 = sphi 0, %s13
    %p10 = scmp.ge.s32.totalorder %s9, 4
    %s19 = sphi 0, %s21
    %s22 = sphi 0, %s19
    %s23 = sphi 0, %s22
    %s39 = sphi 0, %s23
    %s43 = sphi 0, %s43
    %s45 = sphi 0, %s43
    %s46 = sphi 0, %s45
    %s60 = sphi 0, %s46
    %s64 = sphi 0, %s64
    %s66 = sphi 0, %s64
    %s67 = sphi 0, %s66
    %s81 = sphi 0, %s67
    %s87 = sphi 0, %s89
    %s90 = sphi 0, %s87
    %s91 = sphi 0, %s90
    %s107 = sphi 0, %s91
  $region4: #{tpu_custom_call.1} parent=0 // loop_header_branch
    %12 = sbr.rel (%p10) target = $region8
  $region5: #{tpu_custom_call.1} parent=0 // loop_body
    %s14 = ssub.s32 %s9, 1
    %s15 = ssub.s32 %s9, 2
    %s16 = sadd.s32 %s9, 1
    %s17 = ssub.s32 %s9, %s16
    %p18 = scmp.eq.s32.totalorder %s17, 0
    %s20 = sadd.s32 %s19, 1
    %s21 = scalar_select %p18, %s19, %s20
    %p24 = pneg %p18
    %p25 = scmp.eq.s32.totalorder %s9, 1
    %p26 = por %p24, %p25
    %p27 = scmp.ne.s32.totalorder %s19, %s22
    %p28 = scmp.eq.s32.totalorder %s9, 0
    %p29 = por %p27, %p28
    %p30 = scmp.ne.s32.totalorder %s19, %s22
    %p31 = scmp.eq.s32.totalorder %s14, 1
    %p32 = por %p30, %p31
    %p33 = scmp.ne.s32.totalorder %s22, %s23
    %p34 = scmp.eq.s32.totalorder %s14, 0
    %p35 = por %p33, %p34
    %p36 = scmp.ne.s32.totalorder %s22, %s23
    %p37 = scmp.eq.s32.totalorder %s15, 1
    %p38 = por %p36, %p37
    %p40 = scmp.ne.s32.totalorder %s23, %s39
    %p41 = scmp.eq.s32.totalorder %s15, 0
    %p42 = por %p40, %p41
    %s44 = sadd.s32 %s43, 1
    %p47 = scmp.eq.s32.totalorder %s9, 1
    %p48 = scmp.ne.s32.totalorder %s43, %s45
    %p49 = scmp.eq.s32.totalorder %s9, 0
    %p50 = por %p48, %p49
    %p51 = scmp.ne.s32.totalorder %s43, %s45
    %p52 = scmp.eq.s32.totalorder %s14, 1
    %p53 = por %p51, %p52
    %p54 = scmp.ne.s32.totalorder %s45, %s46
    %p55 = scmp.eq.s32.totalorder %s14, 0
    %p56 = por %p54, %p55
    %p57 = scmp.ne.s32.totalorder %s45, %s46
    %p58 = scmp.eq.s32.totalorder %s15, 1
    %p59 = por %p57, %p58
    %p61 = scmp.ne.s32.totalorder %s46, %s60
    %p62 = scmp.eq.s32.totalorder %s15, 0
    %p63 = por %p61, %p62
    %s65 = sadd.s32 %s64, 1
    %p68 = scmp.eq.s32.totalorder %s9, 1
    %p69 = scmp.ne.s32.totalorder %s64, %s66
    %p70 = scmp.eq.s32.totalorder %s9, 0
    %p71 = por %p69, %p70
    %p72 = scmp.ne.s32.totalorder %s64, %s66
    %p73 = scmp.eq.s32.totalorder %s14, 1
    %p74 = por %p72, %p73
    %p75 = scmp.ne.s32.totalorder %s66, %s67
    %p76 = scmp.eq.s32.totalorder %s14, 0
    %p77 = por %p75, %p76
    %p78 = scmp.ne.s32.totalorder %s66, %s67
    %p79 = scmp.eq.s32.totalorder %s15, 1
    %p80 = por %p78, %p79
    %p82 = scmp.ne.s32.totalorder %s67, %s81
    %p83 = scmp.eq.s32.totalorder %s15, 0
    %p84 = por %p82, %p83
    %s85 = ssub.s32 %s9, %s16
    %p86 = scmp.eq.s32.totalorder %s85, 0
    %s88 = sadd.s32 %s87, 1
    %s89 = scalar_select %p86, %s87, %s88
    %p92 = pneg %p86
    %p93 = scmp.eq.s32.totalorder %s9, 1
    %p94 = por %p92, %p93
    %p95 = scmp.ne.s32.totalorder %s87, %s90
    %p96 = scmp.eq.s32.totalorder %s9, 0
    %p97 = por %p95, %p96
    %p98 = scmp.ne.s32.totalorder %s87, %s90
    %p99 = scmp.eq.s32.totalorder %s14, 1
    %p100 = por %p98, %p99
    %p101 = scmp.ne.s32.totalorder %s90, %s91
    %p102 = scmp.eq.s32.totalorder %s14, 0
    %p103 = por %p101, %p102
    %p104 = scmp.ne.s32.totalorder %s90, %s91
    %p105 = scmp.eq.s32.totalorder %s15, 1
    %p106 = por %p104, %p105
    %p108 = scmp.ne.s32.totalorder %s91, %s107
    %p109 = scmp.eq.s32.totalorder %s15, 0
    %p110 = por %p108, %p109
    %p111 = scmp.le.s32.totalorder 1, %s9
    %p112 = scmp.lt.s32.totalorder %s9, 3
    %p113 = pnand %p111, %p112
    %p114 = pneg %p113
    // Predicated region
    $region9: #{tpu_custom_call.1} parent=5 // pred_check
      _
    $region10: #{tpu_custom_call.1} parent=5 // pred_check_branch
      %116 = sbr.rel (%p113) target = $region12
    $region11: #{tpu_custom_call.1} parent=5 // pred_region
      %s117 = ssub.s32 %s9, 1
      // Predicated region
      $region13: #{tpu_custom_call.1} parent=11 // pred_check
        %p118 = pneg %p56
      $region14: #{tpu_custom_call.1} parent=11 // pred_check_branch
        %120 = sbr.rel (%p118) target = $region16
      $region15: #{tpu_custom_call.1} parent=11 // pred_region
        _
      $region16: #{tpu_custom_call.1} parent=11 // pred_fallthru
        _
      // Predicated region
      $region17: #{tpu_custom_call.1} parent=11 // pred_check
        %p121 = pneg %p77
      $region18: #{tpu_custom_call.1} parent=11 // pred_check_branch
        %123 = sbr.rel (%p121) target = $region20
      $region19: #{tpu_custom_call.1} parent=11 // pred_region
        _
      $region20: #{tpu_custom_call.1} parent=11 // pred_fallthru
        _
    $region12: #{tpu_custom_call.1} parent=5 // pred_fallthru
      _
    %p124 = scmp.lt.s32.totalorder %s9, 2
    // Predicated region
    $region21: #{tpu_custom_call.1} parent=5 // pred_check
      %p125 = pneg %p124
    $region22: #{tpu_custom_call.1} parent=5 // pred_check_branch
      %127 = sbr.rel (%p125) target = $region24
    $region23: #{tpu_custom_call.1} parent=5 // pred_region
      // Predicated region
      $region25: #{tpu_custom_call.1} parent=23 // pred_check
        %p128 = pneg %p29
      $region26: #{tpu_custom_call.1} parent=23 // pred_check_branch
        %130 = sbr.rel (%p128) target = $region28
      $region27: #{tpu_custom_call.1} parent=23 // pred_region
        %p131 = scmp.lt.s32.totalorder %s9, 1
        %s132 = scalar_select %p131, %s9, 1
        %s133 = smul.addr %s132, 20
        %s134 = smul.addr %s133, 8
        %s135 = scalar_lea.vmem %s0, %s134
      $region28: #{tpu_custom_call.1} parent=23 // pred_fallthru
        _
    $region24: #{tpu_custom_call.1} parent=5 // pred_fallthru
      _
    %p136 = scmp.le.s32.totalorder 1, %s9
    %p137 = scmp.lt.s32.totalorder %s9, 3
    %p138 = pnand %p136, %p137
    %p139 = pneg %p138
    // Predicated region
    $region29: #{tpu_custom_call.1} parent=5 // pred_check
      _
    $region30: #{tpu_custom_call.1} parent=5 // pred_check_branch
      %141 = sbr.rel (%p138) target = $region32
    $region31: #{tpu_custom_call.1} parent=5 // pred_region
      %s142 = ssub.s32 %s9, 1
      %p143 = scmp.lt.s32.totalorder %s14, 1
      %s144 = scalar_select %p143, %s14, 1
      %s145 = smul.addr %s144, 20
      %s146 = smul.addr %s145, 8
      %s147 = scalar_lea.vmem %s0, %s146
      %p148 = pneg %p35
      %p149 = pneg %p32
      %p150 = pneg %p56
      %p151 = pneg %p53
      %p152 = pneg %p77
      %p153 = pneg %p74
      %p154 = pneg %p103
      %p155 = pneg %p100
      %p156 = scmp.lt.s32.totalorder %s14, 1
      %s157 = scalar_select %p156, %s14, 1
      %s158 = smul.addr %s157, 11
      %s159 = smul.addr %s158, 8
      %s160 = scalar_lea.vmem %s3, %s159
      %p161 = scmp.lt.s32.totalorder %s14, 1
      %s162 = scalar_select %p161, %s14, 1
      %s163 = smul.addr %s162, 20
      %s164 = smul.addr %s163, 8
      %s165 = scalar_lea.vmem %s0, %s164
      %p166 = scmp.lt.s32.totalorder %s14, 1
      %s167 = scalar_select %p166, %s14, 1
      %s168 = smul.addr %s167, 11
      %s169 = smul.addr %s168, 8
      %s170 = scalar_lea.vmem %s3, %s169
      %v171 = vld [vmem:[%s165] sm:$0xff]
      %v172 = vld [vmem:[%s165 + $0x8] sm:$0x3]
      %v173 = vld [vmem:[%s165 + $0x10] sm:$0xff]
      %v174 = vld [vmem:[%s165 + $0x18] sm:$0x3]
      %v175 = vld [vmem:[%s165 + $0x20] sm:$0xff]
      %v176 = vld [vmem:[%s165 + $0x28] sm:$0x3]
      %v177 = vld [vmem:[%s165 + $0x30] sm:$0xff]
      %v178 = vld [vmem:[%s165 + $0x38] sm:$0x3]
      %v179 = vld [vmem:[%s165 + $0x40] sm:$0xff]
      %v180 = vld [vmem:[%s165 + $0x48] sm:$0x3]
      %v181 = vld [vmem:[%s165 + $0x50] sm:$0xff]
      %v182 = vld [vmem:[%s165 + $0x58] sm:$0x3]
      %v183 = vld [vmem:[%s165 + $0x60] sm:$0xff]
      %v184 = vld [vmem:[%s165 + $0x68] sm:$0x3]
      %v185 = vld [vmem:[%s165 + $0x70] sm:$0xff]
      %v186 = vld [vmem:[%s165 + $0x78] sm:$0x3]
      %v187 = vld [vmem:[%s165 + $0x80] sm:$0xff]
      %v188 = vld [vmem:[%s165 + $0x88] sm:$0x3]
      %v189 = vld [vmem:[%s165 + $0x90] sm:$0xff]
      %v190 = vld [vmem:[%s165 + $0x98] sm:$0x3]
      %vm209 = vcmask 1046528
      %v210 = vrot.slane %v171, 1
      %v211 = vrot.slane %v172, 1
      %v212 = vsel %vm209, %v210, %v211
      %v213 = vrot.slane %v173, 1
      %v214 = vrot.slane %v174, 1
      %v215 = vsel %vm209, %v213, %v214
      %v216 = vrot.slane %v175, 1
      %v217 = vrot.slane %v176, 1
      %v218 = vsel %vm209, %v216, %v217
      %v219 = vrot.slane %v177, 1
      %v220 = vrot.slane %v178, 1
      %v221 = vsel %vm209, %v219, %v220
      %v222 = vrot.slane %v179, 1
      %v223 = vrot.slane %v180, 1
      %v224 = vsel %vm209, %v222, %v223
      %v225 = vrot.slane %v181, 1
      %v226 = vrot.slane %v182, 1
      %v227 = vsel %vm209, %v225, %v226
      %v228 = vrot.slane %v183, 1
      %v229 = vrot.slane %v184, 1
      %v230 = vsel %vm209, %v228, %v229
      %v231 = vrot.slane %v185, 1
      %v232 = vrot.slane %v186, 1
      %v233 = vsel %vm209, %v231, %v232
      %v234 = vrot.slane %v187, 1
      %v235 = vrot.slane %v188, 1
      %v236 = vsel %vm209, %v234, %v235
      %237 = vrot.lane.b32.xlu0 %v212, 32
      %v238 = vpop.permute.xlu0 %237
      %239 = vrot.lane.b32.xlu0 %v211, 32
      %v240 = vpop.permute.xlu0 %239
      %241 = vrot.lane.b32.xlu0 %v215, 32
      %v242 = vpop.permute.xlu0 %241
      %243 = vrot.lane.b32.xlu0 %v214, 32
      %v244 = vpop.permute.xlu0 %243
      %245 = vrot.lane.b32.xlu0 %v218, 32
      %v246 = vpop.permute.xlu0 %245
      %247 = vrot.lane.b32.xlu0 %v217, 32
      %v248 = vpop.permute.xlu0 %247
      %249 = vrot.lane.b32.xlu0 %v221, 32
      %v250 = vpop.permute.xlu0 %249
      %251 = vrot.lane.b32.xlu0 %v220, 32
      %v252 = vpop.permute.xlu0 %251
      %253 = vrot.lane.b32.xlu0 %v224, 32
      %v254 = vpop.permute.xlu0 %253
      %255 = vrot.lane.b32.xlu0 %v223, 32
      %v256 = vpop.permute.xlu0 %255
      %257 = vrot.lane.b32.xlu0 %v227, 32
      %v258 = vpop.permute.xlu0 %257
      %259 = vrot.lane.b32.xlu0 %v226, 32
      %v260 = vpop.permute.xlu0 %259
      %261 = vrot.lane.b32.xlu0 %v230, 32
      %v262 = vpop.permute.xlu0 %261
      %263 = vrot.lane.b32.xlu0 %v229, 32
      %v264 = vpop.permute.xlu0 %263
      %265 = vrot.lane.b32.xlu0 %v233, 32
      %v266 = vpop.permute.xlu0 %265
      %267 = vrot.lane.b32.xlu0 %v232, 32
      %v268 = vpop.permute.xlu0 %267
      %269 = vrot.lane.b32.xlu0 %v236, 32
      %v270 = vpop.permute.xlu0 %269
      %271 = vrot.lane.b32.xlu0 %v235, 32
      %v272 = vpop.permute.xlu0 %271
      %293 = vrot.lane.b32.xlu0 %v173, 64
      %v294 = vpop.permute.xlu0 %293
      %295 = vrot.lane.b32.xlu0 %v174, 64
      %v296 = vpop.permute.xlu0 %295
      %297 = vrot.lane.b32.xlu0 %v175, 64
      %v298 = vpop.permute.xlu0 %297
      %299 = vrot.lane.b32.xlu0 %v176, 64
      %v300 = vpop.permute.xlu0 %299
      %301 = vrot.lane.b32.xlu0 %v177, 64
      %v302 = vpop.permute.xlu0 %301
      %303 = vrot.lane.b32.xlu0 %v178, 64
      %v304 = vpop.permute.xlu0 %303
      %305 = vrot.lane.b32.xlu0 %v179, 64
      %v306 = vpop.permute.xlu0 %305
      %307 = vrot.lane.b32.xlu0 %v180, 64
      %v308 = vpop.permute.xlu0 %307
      %309 = vrot.lane.b32.xlu0 %v181, 64
      %v310 = vpop.permute.xlu0 %309
      %311 = vrot.lane.b32.xlu0 %v182, 64
      %v312 = vpop.permute.xlu0 %311
      %313 = vrot.lane.b32.xlu0 %v183, 64
      %v314 = vpop.permute.xlu0 %313
      %315 = vrot.lane.b32.xlu0 %v184, 64
      %v316 = vpop.permute.xlu0 %315
      %317 = vrot.lane.b32.xlu0 %v185, 64
      %v318 = vpop.permute.xlu0 %317
      %319 = vrot.lane.b32.xlu0 %v186, 64
      %v320 = vpop.permute.xlu0 %319
      %321 = vrot.lane.b32.xlu0 %v187, 64
      %v322 = vpop.permute.xlu0 %321
      %323 = vrot.lane.b32.xlu0 %v188, 64
      %v324 = vpop.permute.xlu0 %323
      %325 = vrot.lane.b32.xlu0 %v189, 64
      %v326 = vpop.permute.xlu0 %325
      %327 = vrot.lane.b32.xlu0 %v190, 64
      %v328 = vpop.permute.xlu0 %327
      %v347 = vrot.slane %v189, 1
      %v348 = vrot.slane %v190, 1
      %v349 = vsel %vm209, %v347, %v348
      %350 = vrot.lane.b32.xlu0 %v215, 96
      %v351 = vpop.permute.xlu0 %350
      %352 = vrot.lane.b32.xlu0 %v214, 96
      %v353 = vpop.permute.xlu0 %352
      %354 = vrot.lane.b32.xlu0 %v218, 96
      %v355 = vpop.permute.xlu0 %354
      %356 = vrot.lane.b32.xlu0 %v217, 96
      %v357 = vpop.permute.xlu0 %356
      %358 = vrot.lane.b32.xlu0 %v221, 96
      %v359 = vpop.permute.xlu0 %358
      %360 = vrot.lane.b32.xlu0 %v220, 96
      %v361 = vpop.permute.xlu0 %360
      %362 = vrot.lane.b32.xlu0 %v224, 96
      %v363 = vpop.permute.xlu0 %362
      %364 = vrot.lane.b32.xlu0 %v223, 96
      %v365 = vpop.permute.xlu0 %364
      %366 = vrot.lane.b32.xlu0 %v227, 96
      %v367 = vpop.permute.xlu0 %366
      %368 = vrot.lane.b32.xlu0 %v226, 96
      %v369 = vpop.permute.xlu0 %368
      %370 = vrot.lane.b32.xlu0 %v230, 96
      %v371 = vpop.permute.xlu0 %370
      %372 = vrot.lane.b32.xlu0 %v229, 96
      %v373 = vpop.permute.xlu0 %372
      %374 = vrot.lane.b32.xlu0 %v233, 96
      %v375 = vpop.permute.xlu0 %374
      %376 = vrot.lane.b32.xlu0 %v232, 96
      %v377 = vpop.permute.xlu0 %376
      %378 = vrot.lane.b32.xlu0 %v236, 96
      %v379 = vpop.permute.xlu0 %378
      %380 = vrot.lane.b32.xlu0 %v235, 96
      %v381 = vpop.permute.xlu0 %380
      %382 = vrot.lane.b32.xlu0 %v349, 96
      %v383 = vpop.permute.xlu0 %382
      %384 = vrot.lane.b32.xlu0 %v348, 96
      %v385 = vpop.permute.xlu0 %384
      %vm404 = vcmask 261120
      %v405 = vsel %vm404, %v171, %v238
      %v406 = vsel %vm404, %v172, %v240
      %v407 = vsel %vm404, %v173, %v242
      %v408 = vsel %vm404, %v174, %v244
      %v409 = vsel %vm404, %v175, %v246
      %v410 = vsel %vm404, %v176, %v248
      %v411 = vsel %vm404, %v177, %v250
      %v412 = vsel %vm404, %v178, %v252
      %v413 = vsel %vm404, %v179, %v254
      %v414 = vsel %vm404, %v180, %v256
      %v415 = vsel %vm404, %v181, %v258
      %v416 = vsel %vm404, %v182, %v260
      %v417 = vsel %vm404, %v183, %v262
      %v418 = vsel %vm404, %v184, %v264
      %v419 = vsel %vm404, %v185, %v266
      %v420 = vsel %vm404, %v186, %v268
      %v421 = vsel %vm404, %v187, %v270
      %v422 = vsel %vm404, %v188, %v272
      %vm423 = vcmask 523264
      %v424 = vsel %vm423, %v405, %v294
      %v425 = vsel %vm423, %v406, %v296
      %v426 = vsel %vm423, %v407, %v298
      %v427 = vsel %vm423, %v408, %v300
      %v428 = vsel %vm423, %v409, %v302
      %v429 = vsel %vm423, %v410, %v304
      %v430 = vsel %vm423, %v411, %v306
      %v431 = vsel %vm423, %v412, %v308
      %v432 = vsel %vm423, %v413, %v310
      %v433 = vsel %vm423, %v414, %v312
      %v434 = vsel %vm423, %v415, %v314
      %v435 = vsel %vm423, %v416, %v316
      %v436 = vsel %vm423, %v417, %v318
      %v437 = vsel %vm423, %v418, %v320
      %v438 = vsel %vm423, %v419, %v322
      %v439 = vsel %vm423, %v420, %v324
      %v440 = vsel %vm423, %v421, %v326
      %v441 = vsel %vm423, %v422, %v328
      %vm442 = vcmask 785408
      %v443 = vsel %vm442, %v424, %v351
      %v444 = vsel %vm442, %v425, %v353
      %v445 = vsel %vm442, %v426, %v355
      %v446 = vsel %vm442, %v427, %v357
      %v447 = vsel %vm442, %v428, %v359
      %v448 = vsel %vm442, %v429, %v361
      %v449 = vsel %vm442, %v430, %v363
      %v450 = vsel %vm442, %v431, %v365
      %v451 = vsel %vm442, %v432, %v367
      %v452 = vsel %vm442, %v433, %v369
      %v453 = vsel %vm442, %v434, %v371
      %v454 = vsel %vm442, %v435, %v373
      %v455 = vsel %vm442, %v436, %v375
      %v456 = vsel %vm442, %v437, %v377
      %v457 = vsel %vm442, %v438, %v379
      %v458 = vsel %vm442, %v439, %v381
      %v459 = vsel %vm442, %v440, %v383
      %v460 = vsel %vm442, %v441, %v385
      %v479 = vcombine.high %v443, %v443
      %v481 = vunpack.c.l.s4 1966171168
      %v482 = vunpack.c.0.s8 %v481
      %v483 = vlaneseq
      %v484 = vshrl.u32 %v483, 7
      %v485 = vsub.s32 %v482, %v484
      %v486 = vrot.slane %v443, %v485
      %v488 = vunpack.c.l.s4 1966171168
      %v489 = vunpack.c.0.s8 %v488
      %v490 = vlaneseq
      %v491 = vshrl.u32 %v490, 7
      %v492 = vsub.s32 %v489, %v491
      %v493 = vrot.slane %v479, %v492
      %v494 = vcombine.high %v486, %v486
      %v495 = vcombine.high %v493, %v493
      %v497 = vunpack.c.l.s4 1966171168
      %v498 = vunpack.c.0.s8 %v497
      %v499 = vlaneseq
      %v500 = vshrl.u32 %v499, 7
      %v501 = vsub.s32 %v498, %v500
      %v502 = vrot.slane %v486, %v501
      %v504 = vunpack.c.l.s4 1966171168
      %v505 = vunpack.c.0.s8 %v504
      %v506 = vlaneseq
      %v507 = vshrl.u32 %v506, 7
      %v508 = vsub.s32 %v505, %v507
      %v509 = vrot.slane %v493, %v508
      %v511 = vunpack.c.l.s4 1966171168
      %v512 = vunpack.c.0.s8 %v511
      %v513 = vlaneseq
      %v514 = vshrl.u32 %v513, 7
      %v515 = vsub.s32 %v512, %v514
      %v516 = vrot.slane %v494, %v515
      %v518 = vunpack.c.l.s4 1966171168
      %v519 = vunpack.c.0.s8 %v518
      %v520 = vlaneseq
      %v521 = vshrl.u32 %v520, 7
      %v522 = vsub.s32 %v519, %v521
      %v523 = vrot.slane %v495, %v522
      %v524 = vcombine.high %v502, %v502
      %v525 = vcombine.high %v509, %v509
      %v526 = vcombine.high %v516, %v516
      %v527 = vcombine.high %v523, %v523
      %v529 = vunpack.c.l.s4 1966171168
      %v530 = vunpack.c.0.s8 %v529
      %v531 = vlaneseq
      %v532 = vshrl.u32 %v531, 7
      %v533 = vsub.s32 %v530, %v532
      %v534 = vrot.slane %v444, %v533
      %v536 = vunpack.c.l.s4 1966171168
      %v537 = vunpack.c.0.s8 %v536
      %v538 = vlaneseq
      %v539 = vshrl.u32 %v538, 7
      %v540 = vsub.s32 %v537, %v539
      %v541 = vrot.slane %v534, %v540
      %v542 = vcombine.high %v445, %v445
      %v544 = vunpack.c.l.s4 1966171168
      %v545 = vunpack.c.0.s8 %v544
      %v546 = vlaneseq
      %v547 = vshrl.u32 %v546, 7
      %v548 = vsub.s32 %v545, %v547
      %v549 = vrot.slane %v445, %v548
      %v551 = vunpack.c.l.s4 1966171168
      %v552 = vunpack.c.0.s8 %v551
      %v553 = vlaneseq
      %v554 = vshrl.u32 %v553, 7
      %v555 = vsub.s32 %v552, %v554
      %v556 = vrot.slane %v542, %v555
      %v557 = vcombine.high %v549, %v549
      %v558 = vcombine.high %v556, %v556
      %v560 = vunpack.c.l.s4 1966171168
      %v561 = vunpack.c.0.s8 %v560
      %v562 = vlaneseq
      %v563 = vshrl.u32 %v562, 7
      %v564 = vsub.s32 %v561, %v563
      %v565 = vrot.slane %v549, %v564
      %v567 = vunpack.c.l.s4 1966171168
      %v568 = vunpack.c.0.s8 %v567
      %v569 = vlaneseq
      %v570 = vshrl.u32 %v569, 7
      %v571 = vsub.s32 %v568, %v570
      %v572 = vrot.slane %v556, %v571
      %v574 = vunpack.c.l.s4 1966171168
      %v575 = vunpack.c.0.s8 %v574
      %v576 = vlaneseq
      %v577 = vshrl.u32 %v576, 7
      %v578 = vsub.s32 %v575, %v577
      %v579 = vrot.slane %v557, %v578
      %v581 = vunpack.c.l.s4 1966171168
      %v582 = vunpack.c.0.s8 %v581
      %v583 = vlaneseq
      %v584 = vshrl.u32 %v583, 7
      %v585 = vsub.s32 %v582, %v584
      %v586 = vrot.slane %v558, %v585
      %v587 = vcombine.high %v565, %v565
      %v588 = vcombine.high %v572, %v572
      %v589 = vcombine.high %v579, %v579
      %v590 = vcombine.high %v586, %v586
      %v592 = vunpack.c.l.s4 1966171168
      %v593 = vunpack.c.0.s8 %v592
      %v594 = vlaneseq
      %v595 = vshrl.u32 %v594, 7
      %v596 = vsub.s32 %v593, %v595
      %v597 = vrot.slane %v446, %v596
      %v599 = vunpack.c.l.s4 1966171168
      %v600 = vunpack.c.0.s8 %v599
      %v601 = vlaneseq
      %v602 = vshrl.u32 %v601, 7
      %v603 = vsub.s32 %v600, %v602
      %v604 = vrot.slane %v597, %v603
      %v605 = vcombine.high %v447, %v447
      %v607 = vunpack.c.l.s4 1966171168
      %v608 = vunpack.c.0.s8 %v607
      %v609 = vlaneseq
      %v610 = vshrl.u32 %v609, 7
      %v611 = vsub.s32 %v608, %v610
      %v612 = vrot.slane %v447, %v611
      %v614 = vunpack.c.l.s4 1966171168
      %v615 = vunpack.c.0.s8 %v614
      %v616 = vlaneseq
      %v617 = vshrl.u32 %v616, 7
      %v618 = vsub.s32 %v615, %v617
      %v619 = vrot.slane %v605, %v618
      %v620 = vcombine.high %v612, %v612
      %v621 = vcombine.high %v619, %v619
      %v623 = vunpack.c.l.s4 1966171168
      %v624 = vunpack.c.0.s8 %v623
      %v625 = vlaneseq
      %v626 = vshrl.u32 %v625, 7
      %v627 = vsub.s32 %v624, %v626
      %v628 = vrot.slane %v612, %v627
      %v630 = vunpack.c.l.s4 1966171168
      %v631 = vunpack.c.0.s8 %v630
      %v632 = vlaneseq
      %v633 = vshrl.u32 %v632, 7
      %v634 = vsub.s32 %v631, %v633
      %v635 = vrot.slane %v619, %v634
      %v637 = vunpack.c.l.s4 1966171168
      %v638 = vunpack.c.0.s8 %v637
      %v639 = vlaneseq
      %v640 = vshrl.u32 %v639, 7
      %v641 = vsub.s32 %v638, %v640
      %v642 = vrot.slane %v620, %v641
      %v644 = vunpack.c.l.s4 1966171168
      %v645 = vunpack.c.0.s8 %v644
      %v646 = vlaneseq
      %v647 = vshrl.u32 %v646, 7
      %v648 = vsub.s32 %v645, %v647
      %v649 = vrot.slane %v621, %v648
      %v650 = vcombine.high %v628, %v628
      %v651 = vcombine.high %v635, %v635
      %v652 = vcombine.high %v642, %v642
      %v653 = vcombine.high %v649, %v649
      %v655 = vunpack.c.l.s4 1966171168
      %v656 = vunpack.c.0.s8 %v655
      %v657 = vlaneseq
      %v658 = vshrl.u32 %v657, 7
      %v659 = vsub.s32 %v656, %v658
      %v660 = vrot.slane %v448, %v659
      %v662 = vunpack.c.l.s4 1966171168
      %v663 = vunpack.c.0.s8 %v662
      %v664 = vlaneseq
      %v665 = vshrl.u32 %v664, 7
      %v666 = vsub.s32 %v663, %v665
      %v667 = vrot.slane %v660, %v666
      %v668 = vcombine.high %v449, %v449
      %v670 = vunpack.c.l.s4 1966171168
      %v671 = vunpack.c.0.s8 %v670
      %v672 = vlaneseq
      %v673 = vshrl.u32 %v672, 7
      %v674 = vsub.s32 %v671, %v673
      %v675 = vrot.slane %v449, %v674
      %v677 = vunpack.c.l.s4 1966171168
      %v678 = vunpack.c.0.s8 %v677
      %v679 = vlaneseq
      %v680 = vshrl.u32 %v679, 7
      %v681 = vsub.s32 %v678, %v680
      %v682 = vrot.slane %v668, %v681
      %v683 = vcombine.high %v675, %v675
      %v684 = vcombine.high %v682, %v682
      %v686 = vunpack.c.l.s4 1966171168
      %v687 = vunpack.c.0.s8 %v686
      %v688 = vlaneseq
      %v689 = vshrl.u32 %v688, 7
      %v690 = vsub.s32 %v687, %v689
      %v691 = vrot.slane %v675, %v690
      %v693 = vunpack.c.l.s4 1966171168
      %v694 = vunpack.c.0.s8 %v693
      %v695 = vlaneseq
      %v696 = vshrl.u32 %v695, 7
      %v697 = vsub.s32 %v694, %v696
      %v698 = vrot.slane %v682, %v697
      %v700 = vunpack.c.l.s4 1966171168
      %v701 = vunpack.c.0.s8 %v700
      %v702 = vlaneseq
      %v703 = vshrl.u32 %v702, 7
      %v704 = vsub.s32 %v701, %v703
      %v705 = vrot.slane %v683, %v704
      %v707 = vunpack.c.l.s4 1966171168
      %v708 = vunpack.c.0.s8 %v707
      %v709 = vlaneseq
      %v710 = vshrl.u32 %v709, 7
      %v711 = vsub.s32 %v708, %v710
      %v712 = vrot.slane %v684, %v711
      %v713 = vcombine.high %v691, %v691
      %v714 = vcombine.high %v698, %v698
      %v715 = vcombine.high %v705, %v705
      %v716 = vcombine.high %v712, %v712
      %v718 = vunpack.c.l.s4 1966171168
      %v719 = vunpack.c.0.s8 %v718
      %v720 = vlaneseq
      %v721 = vshrl.u32 %v720, 7
      %v722 = vsub.s32 %v719, %v721
      %v723 = vrot.slane %v450, %v722
      %v725 = vunpack.c.l.s4 1966171168
      %v726 = vunpack.c.0.s8 %v725
      %v727 = vlaneseq
      %v728 = vshrl.u32 %v727, 7
      %v729 = vsub.s32 %v726, %v728
      %v730 = vrot.slane %v723, %v729
      %v731 = vcombine.high %v451, %v451
      %v733 = vunpack.c.l.s4 1966171168
      %v734 = vunpack.c.0.s8 %v733
      %v735 = vlaneseq
      %v736 = vshrl.u32 %v735, 7
      %v737 = vsub.s32 %v734, %v736
      %v738 = vrot.slane %v451, %v737
      %v740 = vunpack.c.l.s4 1966171168
      %v741 = vunpack.c.0.s8 %v740
      %v742 = vlaneseq
      %v743 = vshrl.u32 %v742, 7
      %v744 = vsub.s32 %v741, %v743
      %v745 = vrot.slane %v731, %v744
      %v746 = vcombine.high %v738, %v738
      %v747 = vcombine.high %v745, %v745
      %v749 = vunpack.c.l.s4 1966171168
      %v750 = vunpack.c.0.s8 %v749
      %v751 = vlaneseq
      %v752 = vshrl.u32 %v751, 7
      %v753 = vsub.s32 %v750, %v752
      %v754 = vrot.slane %v738, %v753
      %v756 = vunpack.c.l.s4 1966171168
      %v757 = vunpack.c.0.s8 %v756
      %v758 = vlaneseq
      %v759 = vshrl.u32 %v758, 7
      %v760 = vsub.s32 %v757, %v759
      %v761 = vrot.slane %v745, %v760
      %v763 = vunpack.c.l.s4 1966171168
      %v764 = vunpack.c.0.s8 %v763
      %v765 = vlaneseq
      %v766 = vshrl.u32 %v765, 7
      %v767 = vsub.s32 %v764, %v766
      %v768 = vrot.slane %v746, %v767
      %v770 = vunpack.c.l.s4 1966171168
      %v771 = vunpack.c.0.s8 %v770
      %v772 = vlaneseq
      %v773 = vshrl.u32 %v772, 7
      %v774 = vsub.s32 %v771, %v773
      %v775 = vrot.slane %v747, %v774
      %v776 = vcombine.high %v754, %v754
      %v777 = vcombine.high %v761, %v761
      %v778 = vcombine.high %v768, %v768
      %v779 = vcombine.high %v775, %v775
      %v781 = vunpack.c.l.s4 1966171168
      %v782 = vunpack.c.0.s8 %v781
      %v783 = vlaneseq
      %v784 = vshrl.u32 %v783, 7
      %v785 = vsub.s32 %v782, %v784
      %v786 = vrot.slane %v452, %v785
      %v788 = vunpack.c.l.s4 1966171168
      %v789 = vunpack.c.0.s8 %v788
      %v790 = vlaneseq
      %v791 = vshrl.u32 %v790, 7
      %v792 = vsub.s32 %v789, %v791
      %v793 = vrot.slane %v786, %v792
      %v794 = vcombine.high %v453, %v453
      %v796 = vunpack.c.l.s4 1966171168
      %v797 = vunpack.c.0.s8 %v796
      %v798 = vlaneseq
      %v799 = vshrl.u32 %v798, 7
      %v800 = vsub.s32 %v797, %v799
      %v801 = vrot.slane %v453, %v800
      %v803 = vunpack.c.l.s4 1966171168
      %v804 = vunpack.c.0.s8 %v803
      %v805 = vlaneseq
      %v806 = vshrl.u32 %v805, 7
      %v807 = vsub.s32 %v804, %v806
      %v808 = vrot.slane %v794, %v807
      %v809 = vcombine.high %v801, %v801
      %v810 = vcombine.high %v808, %v808
      %v812 = vunpack.c.l.s4 1966171168
      %v813 = vunpack.c.0.s8 %v812
      %v814 = vlaneseq
      %v815 = vshrl.u32 %v814, 7
      %v816 = vsub.s32 %v813, %v815
      %v817 = vrot.slane %v801, %v816
      %v819 = vunpack.c.l.s4 1966171168
      %v820 = vunpack.c.0.s8 %v819
      %v821 = vlaneseq
      %v822 = vshrl.u32 %v821, 7
      %v823 = vsub.s32 %v820, %v822
      %v824 = vrot.slane %v808, %v823
      %v826 = vunpack.c.l.s4 1966171168
      %v827 = vunpack.c.0.s8 %v826
      %v828 = vlaneseq
      %v829 = vshrl.u32 %v828, 7
      %v830 = vsub.s32 %v827, %v829
      %v831 = vrot.slane %v809, %v830
      %v833 = vunpack.c.l.s4 1966171168
      %v834 = vunpack.c.0.s8 %v833
      %v835 = vlaneseq
      %v836 = vshrl.u32 %v835, 7
      %v837 = vsub.s32 %v834, %v836
      %v838 = vrot.slane %v810, %v837
      %v839 = vcombine.high %v817, %v817
      %v840 = vcombine.high %v824, %v824
      %v841 = vcombine.high %v831, %v831
      %v842 = vcombine.high %v838, %v838
      %v844 = vunpack.c.l.s4 1966171168
      %v845 = vunpack.c.0.s8 %v844
      %v846 = vlaneseq
      %v847 = vshrl.u32 %v846, 7
      %v848 = vsub.s32 %v845, %v847
      %v849 = vrot.slane %v454, %v848
      %v851 = vunpack.c.l.s4 1966171168
      %v852 = vunpack.c.0.s8 %v851
      %v853 = vlaneseq
      %v854 = vshrl.u32 %v853, 7
      %v855 = vsub.s32 %v852, %v854
      %v856 = vrot.slane %v849, %v855
      %v857 = vcombine.high %v455, %v455
      %v859 = vunpack.c.l.s4 1966171168
      %v860 = vunpack.c.0.s8 %v859
      %v861 = vlaneseq
      %v862 = vshrl.u32 %v861, 7
      %v863 = vsub.s32 %v860, %v862
      %v864 = vrot.slane %v455, %v863
      %v866 = vunpack.c.l.s4 1966171168
      %v867 = vunpack.c.0.s8 %v866
      %v868 = vlaneseq
      %v869 = vshrl.u32 %v868, 7
      %v870 = vsub.s32 %v867, %v869
      %v871 = vrot.slane %v857, %v870
      %v872 = vcombine.high %v864, %v864
      %v873 = vcombine.high %v871, %v871
      %v875 = vunpack.c.l.s4 1966171168
      %v876 = vunpack.c.0.s8 %v875
      %v877 = vlaneseq
      %v878 = vshrl.u32 %v877, 7
      %v879 = vsub.s32 %v876, %v878
      %v880 = vrot.slane %v864, %v879
      %v882 = vunpack.c.l.s4 1966171168
      %v883 = vunpack.c.0.s8 %v882
      %v884 = vlaneseq
      %v885 = vshrl.u32 %v884, 7
      %v886 = vsub.s32 %v883, %v885
      %v887 = vrot.slane %v871, %v886
      %v889 = vunpack.c.l.s4 1966171168
      %v890 = vunpack.c.0.s8 %v889
      %v891 = vlaneseq
      %v892 = vshrl.u32 %v891, 7
      %v893 = vsub.s32 %v890, %v892
      %v894 = vrot.slane %v872, %v893
      %v896 = vunpack.c.l.s4 1966171168
      %v897 = vunpack.c.0.s8 %v896
      %v898 = vlaneseq
      %v899 = vshrl.u32 %v898, 7
      %v900 = vsub.s32 %v897, %v899
      %v901 = vrot.slane %v873, %v900
      %v902 = vcombine.high %v880, %v880
      %v903 = vcombine.high %v887, %v887
      %v904 = vcombine.high %v894, %v894
      %v905 = vcombine.high %v901, %v901
      %v907 = vunpack.c.l.s4 1966171168
      %v908 = vunpack.c.0.s8 %v907
      %v909 = vlaneseq
      %v910 = vshrl.u32 %v909, 7
      %v911 = vsub.s32 %v908, %v910
      %v912 = vrot.slane %v456, %v911
      %v914 = vunpack.c.l.s4 1966171168
      %v915 = vunpack.c.0.s8 %v914
      %v916 = vlaneseq
      %v917 = vshrl.u32 %v916, 7
      %v918 = vsub.s32 %v915, %v917
      %v919 = vrot.slane %v912, %v918
      %v920 = vcombine.high %v457, %v457
      %v922 = vunpack.c.l.s4 1966171168
      %v923 = vunpack.c.0.s8 %v922
      %v924 = vlaneseq
      %v925 = vshrl.u32 %v924, 7
      %v926 = vsub.s32 %v923, %v925
      %v927 = vrot.slane %v457, %v926
      %v929 = vunpack.c.l.s4 1966171168
      %v930 = vunpack.c.0.s8 %v929
      %v931 = vlaneseq
      %v932 = vshrl.u32 %v931, 7
      %v933 = vsub.s32 %v930, %v932
      %v934 = vrot.slane %v920, %v933
      %v935 = vcombine.high %v927, %v927
      %v936 = vcombine.high %v934, %v934
      %v938 = vunpack.c.l.s4 1966171168
      %v939 = vunpack.c.0.s8 %v938
      %v940 = vlaneseq
      %v941 = vshrl.u32 %v940, 7
      %v942 = vsub.s32 %v939, %v941
      %v943 = vrot.slane %v927, %v942
      %v945 = vunpack.c.l.s4 1966171168
      %v946 = vunpack.c.0.s8 %v945
      %v947 = vlaneseq
      %v948 = vshrl.u32 %v947, 7
      %v949 = vsub.s32 %v946, %v948
      %v950 = vrot.slane %v934, %v949
      %v952 = vunpack.c.l.s4 1966171168
      %v953 = vunpack.c.0.s8 %v952
      %v954 = vlaneseq
      %v955 = vshrl.u32 %v954, 7
      %v956 = vsub.s32 %v953, %v955
      %v957 = vrot.slane %v935, %v956
      %v959 = vunpack.c.l.s4 1966171168
      %v960 = vunpack.c.0.s8 %v959
      %v961 = vlaneseq
      %v962 = vshrl.u32 %v961, 7
      %v963 = vsub.s32 %v960, %v962
      %v964 = vrot.slane %v936, %v963
      %v965 = vcombine.high %v943, %v943
      %v966 = vcombine.high %v950, %v950
      %v967 = vcombine.high %v957, %v957
      %v968 = vcombine.high %v964, %v964
      %v970 = vunpack.c.l.s4 1966171168
      %v971 = vunpack.c.0.s8 %v970
      %v972 = vlaneseq
      %v973 = vshrl.u32 %v972, 7
      %v974 = vsub.s32 %v971, %v973
      %v975 = vrot.slane %v458, %v974
      %v977 = vunpack.c.l.s4 1966171168
      %v978 = vunpack.c.0.s8 %v977
      %v979 = vlaneseq
      %v980 = vshrl.u32 %v979, 7
      %v981 = vsub.s32 %v978, %v980
      %v982 = vrot.slane %v975, %v981
      %v983 = vcombine.high %v459, %v459
      %v985 = vunpack.c.l.s4 1966171168
      %v986 = vunpack.c.0.s8 %v985
      %v987 = vlaneseq
      %v988 = vshrl.u32 %v987, 7
      %v989 = vsub.s32 %v986, %v988
      %v990 = vrot.slane %v459, %v989
      %v992 = vunpack.c.l.s4 1966171168
      %v993 = vunpack.c.0.s8 %v992
      %v994 = vlaneseq
      %v995 = vshrl.u32 %v994, 7
      %v996 = vsub.s32 %v993, %v995
      %v997 = vrot.slane %v983, %v996
      %v998 = vcombine.high %v990, %v990
      %v999 = vcombine.high %v997, %v997
      %v1001 = vunpack.c.l.s4 1966171168
      %v1002 = vunpack.c.0.s8 %v1001
      %v1003 = vlaneseq
      %v1004 = vshrl.u32 %v1003, 7
      %v1005 = vsub.s32 %v1002, %v1004
      %v1006 = vrot.slane %v990, %v1005
      %v1008 = vunpack.c.l.s4 1966171168
      %v1009 = vunpack.c.0.s8 %v1008
      %v1010 = vlaneseq
      %v1011 = vshrl.u32 %v1010, 7
      %v1012 = vsub.s32 %v1009, %v1011
      %v1013 = vrot.slane %v997, %v1012
      %v1015 = vunpack.c.l.s4 1966171168
      %v1016 = vunpack.c.0.s8 %v1015
      %v1017 = vlaneseq
      %v1018 = vshrl.u32 %v1017, 7
      %v1019 = vsub.s32 %v1016, %v1018
      %v1020 = vrot.slane %v998, %v1019
      %v1022 = vunpack.c.l.s4 1966171168
      %v1023 = vunpack.c.0.s8 %v1022
      %v1024 = vlaneseq
      %v1025 = vshrl.u32 %v1024, 7
      %v1026 = vsub.s32 %v1023, %v1025
      %v1027 = vrot.slane %v999, %v1026
      %v1028 = vcombine.high %v1006, %v1006
      %v1029 = vcombine.high %v1013, %v1013
      %v1030 = vcombine.high %v1020, %v1020
      %v1031 = vcombine.high %v1027, %v1027
      %v1033 = vunpack.c.l.s4 1966171168
      %v1034 = vunpack.c.0.s8 %v1033
      %v1035 = vlaneseq
      %v1036 = vshrl.u32 %v1035, 7
      %v1037 = vsub.s32 %v1034, %v1036
      %v1038 = vrot.slane %v460, %v1037
      %v1040 = vunpack.c.l.s4 1966171168
      %v1041 = vunpack.c.0.s8 %v1040
      %v1042 = vlaneseq
      %v1043 = vshrl.u32 %v1042, 7
      %v1044 = vsub.s32 %v1041, %v1043
      %v1045 = vrot.slane %v1038, %v1044
      %v1046 = vld [vmem:[%s1] sm:$0xff]
      %v1047 = vld [vmem:[%s1 + $0x8] sm:$0xff]
      %v1048 = vld [vmem:[%s1 + $0x10] sm:$0xff]
      %v1049 = vld [vmem:[%s1 + $0x18] sm:$0xff]
      %v1050 = vld [vmem:[%s1 + $0x20] sm:$0xff]
      %v1051 = vld [vmem:[%s1 + $0x28] sm:$0xff]
      %v1052 = vld [vmem:[%s1 + $0x30] sm:$0xff]
      %v1053 = vld [vmem:[%s1 + $0x38] sm:$0xff]
      %v1054 = vld [vmem:[%s1 + $0x40] sm:$0xff]
      %v1055 = vld [vmem:[%s1 + $0x48] sm:$0xff]
      %v1056 = vld [vmem:[%s1 + $0x50] sm:$0xff]
      %v1057 = vld [vmem:[%s1 + $0x58] sm:$0xff]
      %v1058 = vld [vmem:[%s1 + $0x60] sm:$0xff]
      %v1059 = vld [vmem:[%s1 + $0x68] sm:$0xff]
      %v1060 = vld [vmem:[%s1 + $0x70] sm:$0xff]
      %v1061 = vld [vmem:[%s1 + $0x78] sm:$0xff]
      %v1062 = vld [vmem:[%s2] sm:$0x1]
      %v1064 = vlaneseq
      %v1065 = vshrl.u32 %v1064, 7
      %v1066 = vsub.s32 0, %v1065
      %v1067 = vrot.slane %v1062, %v1066
      %v1069 = vcombine.low %v502, %v516
      %v1070 = vcombine.low %v524, %v526
      %v1071 = vcombine.low %v509, %v523
      %v1072 = vcombine.low %v525, %v527
      %v1074 = vunpack.c.l.s4 1966171168
      %v1075 = vunpack.c.0.s8 %v1074
      %v1076 = vlaneseq
      %v1077 = vshrl.u32 %v1076, 7
      %v1078 = vsub.s32 %v1075, %v1077
      %v1079 = vrot.slane %v1069, %v1078
      %v1081 = vunpack.c.l.s4 1966171168
      %v1082 = vunpack.c.0.s8 %v1081
      %v1083 = vlaneseq
      %v1084 = vshrl.u32 %v1083, 7
      %v1085 = vsub.s32 %v1082, %v1084
      %v1086 = vrot.slane %v1070, %v1085
      %v1088 = vunpack.c.l.s4 1966171168
      %v1089 = vunpack.c.0.s8 %v1088
      %v1090 = vlaneseq
      %v1091 = vshrl.u32 %v1090, 7
      %v1092 = vsub.s32 %v1089, %v1091
      %v1093 = vrot.slane %v1071, %v1092
      %v1095 = vunpack.c.l.s4 1966171168
      %v1096 = vunpack.c.0.s8 %v1095
      %v1097 = vlaneseq
      %v1098 = vshrl.u32 %v1097, 7
      %v1099 = vsub.s32 %v1096, %v1098
      %v1100 = vrot.slane %v1072, %v1099
      %v1101 = vcombine.low %v1079, %v1086
      %v1102 = vcombine.low %v1093, %v1100
      %v1104 = vunpack.c.l.s4 1966171168
      %v1105 = vunpack.c.0.s8 %v1104
      %v1106 = vlaneseq
      %v1107 = vshrl.u32 %v1106, 7
      %v1108 = vsub.s32 %v1105, %v1107
      %v1109 = vrot.slane %v1101, %v1108
      %v1111 = vunpack.c.l.s4 1966171168
      %v1112 = vunpack.c.0.s8 %v1111
      %v1113 = vlaneseq
      %v1114 = vshrl.u32 %v1113, 7
      %v1115 = vsub.s32 %v1112, %v1114
      %v1116 = vrot.slane %v1102, %v1115
      %v1117 = vcombine.low %v1109, %v1116
      %v1118 = vcombine.low %v541, %v565
      %v1119 = vcombine.low %v579, %v587
      %v1120 = vcombine.low %v589, %v572
      %v1121 = vcombine.low %v586, %v588
      %v1123 = vunpack.c.l.s4 1966171168
      %v1124 = vunpack.c.0.s8 %v1123
      %v1125 = vlaneseq
      %v1126 = vshrl.u32 %v1125, 7
      %v1127 = vsub.s32 %v1124, %v1126
      %v1128 = vrot.slane %v1118, %v1127
      %v1130 = vunpack.c.l.s4 1966171168
      %v1131 = vunpack.c.0.s8 %v1130
      %v1132 = vlaneseq
      %v1133 = vshrl.u32 %v1132, 7
      %v1134 = vsub.s32 %v1131, %v1133
      %v1135 = vrot.slane %v1119, %v1134
      %v1137 = vunpack.c.l.s4 1966171168
      %v1138 = vunpack.c.0.s8 %v1137
      %v1139 = vlaneseq
      %v1140 = vshrl.u32 %v1139, 7
      %v1141 = vsub.s32 %v1138, %v1140
      %v1142 = vrot.slane %v1120, %v1141
      %v1144 = vunpack.c.l.s4 1966171168
      %v1145 = vunpack.c.0.s8 %v1144
      %v1146 = vlaneseq
      %v1147 = vshrl.u32 %v1146, 7
      %v1148 = vsub.s32 %v1145, %v1147
      %v1149 = vrot.slane %v1121, %v1148
      %v1150 = vcombine.low %v1128, %v1135
      %v1151 = vcombine.low %v1142, %v1149
      %v1153 = vunpack.c.l.s4 1966171168
      %v1154 = vunpack.c.0.s8 %v1153
      %v1155 = vlaneseq
      %v1156 = vshrl.u32 %v1155, 7
      %v1157 = vsub.s32 %v1154, %v1156
      %v1158 = vrot.slane %v1150, %v1157
      %v1160 = vunpack.c.l.s4 1966171168
      %v1161 = vunpack.c.0.s8 %v1160
      %v1162 = vlaneseq
      %v1163 = vshrl.u32 %v1162, 7
      %v1164 = vsub.s32 %v1161, %v1163
      %v1165 = vrot.slane %v1151, %v1164
      %v1166 = vcombine.low %v1158, %v1165
      %v1167 = vcombine.low %v590, %v604
      %v1168 = vcombine.low %v628, %v642
      %v1169 = vcombine.low %v650, %v652
      %v1170 = vcombine.low %v635, %v649
      %v1172 = vunpack.c.l.s4 1966171168
      %v1173 = vunpack.c.0.s8 %v1172
      %v1174 = vlaneseq
      %v1175 = vshrl.u32 %v1174, 7
      %v1176 = vsub.s32 %v1173, %v1175
      %v1177 = vrot.slane %v1167, %v1176
      %v1179 = vunpack.c.l.s4 1966171168
      %v1180 = vunpack.c.0.s8 %v1179
      %v1181 = vlaneseq
      %v1182 = vshrl.u32 %v1181, 7
      %v1183 = vsub.s32 %v1180, %v1182
      %v1184 = vrot.slane %v1168, %v1183
      %v1186 = vunpack.c.l.s4 1966171168
      %v1187 = vunpack.c.0.s8 %v1186
      %v1188 = vlaneseq
      %v1189 = vshrl.u32 %v1188, 7
      %v1190 = vsub.s32 %v1187, %v1189
      %v1191 = vrot.slane %v1169, %v1190
      %v1193 = vunpack.c.l.s4 1966171168
      %v1194 = vunpack.c.0.s8 %v1193
      %v1195 = vlaneseq
      %v1196 = vshrl.u32 %v1195, 7
      %v1197 = vsub.s32 %v1194, %v1196
      %v1198 = vrot.slane %v1170, %v1197
      %v1199 = vcombine.low %v1177, %v1184
      %v1200 = vcombine.low %v1191, %v1198
      %v1202 = vunpack.c.l.s4 1966171168
      %v1203 = vunpack.c.0.s8 %v1202
      %v1204 = vlaneseq
      %v1205 = vshrl.u32 %v1204, 7
      %v1206 = vsub.s32 %v1203, %v1205
      %v1207 = vrot.slane %v1199, %v1206
      %v1209 = vunpack.c.l.s4 1966171168
      %v1210 = vunpack.c.0.s8 %v1209
      %v1211 = vlaneseq
      %v1212 = vshrl.u32 %v1211, 7
      %v1213 = vsub.s32 %v1210, %v1212
      %v1214 = vrot.slane %v1200, %v1213
      %v1215 = vcombine.low %v1207, %v1214
      %v1216 = vcombine.low %v651, %v653
      %v1217 = vcombine.low %v667, %v691
      %v1218 = vcombine.low %v705, %v713
      %v1219 = vcombine.low %v715, %v698
      %v1221 = vunpack.c.l.s4 1966171168
      %v1222 = vunpack.c.0.s8 %v1221
      %v1223 = vlaneseq
      %v1224 = vshrl.u32 %v1223, 7
      %v1225 = vsub.s32 %v1222, %v1224
      %v1226 = vrot.slane %v1216, %v1225
      %v1228 = vunpack.c.l.s4 1966171168
      %v1229 = vunpack.c.0.s8 %v1228
      %v1230 = vlaneseq
      %v1231 = vshrl.u32 %v1230, 7
      %v1232 = vsub.s32 %v1229, %v1231
      %v1233 = vrot.slane %v1217, %v1232
      %v1235 = vunpack.c.l.s4 1966171168
      %v1236 = vunpack.c.0.s8 %v1235
      %v1237 = vlaneseq
      %v1238 = vshrl.u32 %v1237, 7
      %v1239 = vsub.s32 %v1236, %v1238
      %v1240 = vrot.slane %v1218, %v1239
      %v1242 = vunpack.c.l.s4 1966171168
      %v1243 = vunpack.c.0.s8 %v1242
      %v1244 = vlaneseq
      %v1245 = vshrl.u32 %v1244, 7
      %v1246 = vsub.s32 %v1243, %v1245
      %v1247 = vrot.slane %v1219, %v1246
      %v1248 = vcombine.low %v1226, %v1233
      %v1249 = vcombine.low %v1240, %v1247
      %v1251 = vunpack.c.l.s4 1966171168
      %v1252 = vunpack.c.0.s8 %v1251
      %v1253 = vlaneseq
      %v1254 = vshrl.u32 %v1253, 7
      %v1255 = vsub.s32 %v1252, %v1254
      %v1256 = vrot.slane %v1248, %v1255
      %v1258 = vunpack.c.l.s4 1966171168
      %v1259 = vunpack.c.0.s8 %v1258
      %v1260 = vlaneseq
      %v1261 = vshrl.u32 %v1260, 7
      %v1262 = vsub.s32 %v1259, %v1261
      %v1263 = vrot.slane %v1249, %v1262
      %v1264 = vcombine.low %v1256, %v1263
      %v1265 = vcombine.low %v712, %v714
      %v1266 = vcombine.low %v716, %v730
      %v1267 = vcombine.low %v754, %v768
      %v1268 = vcombine.low %v776, %v778
      %v1270 = vunpack.c.l.s4 1966171168
      %v1271 = vunpack.c.0.s8 %v1270
      %v1272 = vlaneseq
      %v1273 = vshrl.u32 %v1272, 7
      %v1274 = vsub.s32 %v1271, %v1273
      %v1275 = vrot.slane %v1265, %v1274
      %v1277 = vunpack.c.l.s4 1966171168
      %v1278 = vunpack.c.0.s8 %v1277
      %v1279 = vlaneseq
      %v1280 = vshrl.u32 %v1279, 7
      %v1281 = vsub.s32 %v1278, %v1280
      %v1282 = vrot.slane %v1266, %v1281
      %v1284 = vunpack.c.l.s4 1966171168
      %v1285 = vunpack.c.0.s8 %v1284
      %v1286 = vlaneseq
      %v1287 = vshrl.u32 %v1286, 7
      %v1288 = vsub.s32 %v1285, %v1287
      %v1289 = vrot.slane %v1267, %v1288
      %v1291 = vunpack.c.l.s4 1966171168
      %v1292 = vunpack.c.0.s8 %v1291
      %v1293 = vlaneseq
      %v1294 = vshrl.u32 %v1293, 7
      %v1295 = vsub.s32 %v1292, %v1294
      %v1296 = vrot.slane %v1268, %v1295
      %v1297 = vcombine.low %v1275, %v1282
      %v1298 = vcombine.low %v1289, %v1296
      %v1300 = vunpack.c.l.s4 1966171168
      %v1301 = vunpack.c.0.s8 %v1300
      %v1302 = vlaneseq
      %v1303 = vshrl.u32 %v1302, 7
      %v1304 = vsub.s32 %v1301, %v1303
      %v1305 = vrot.slane %v1297, %v1304
      %v1307 = vunpack.c.l.s4 1966171168
      %v1308 = vunpack.c.0.s8 %v1307
      %v1309 = vlaneseq
      %v1310 = vshrl.u32 %v1309, 7
      %v1311 = vsub.s32 %v1308, %v1310
      %v1312 = vrot.slane %v1298, %v1311
      %v1313 = vcombine.low %v1305, %v1312
      %v1314 = vcombine.low %v761, %v775
      %v1315 = vcombine.low %v777, %v779
      %v1316 = vcombine.low %v793, %v817
      %v1317 = vcombine.low %v831, %v839
      %v1319 = vunpack.c.l.s4 1966171168
      %v1320 = vunpack.c.0.s8 %v1319
      %v1321 = vlaneseq
      %v1322 = vshrl.u32 %v1321, 7
      %v1323 = vsub.s32 %v1320, %v1322
      %v1324 = vrot.slane %v1314, %v1323
      %v1326 = vunpack.c.l.s4 1966171168
      %v1327 = vunpack.c.0.s8 %v1326
      %v1328 = vlaneseq
      %v1329 = vshrl.u32 %v1328, 7
      %v1330 = vsub.s32 %v1327, %v1329
      %v1331 = vrot.slane %v1315, %v1330
      %v1333 = vunpack.c.l.s4 1966171168
      %v1334 = vunpack.c.0.s8 %v1333
      %v1335 = vlaneseq
      %v1336 = vshrl.u32 %v1335, 7
      %v1337 = vsub.s32 %v1334, %v1336
      %v1338 = vrot.slane %v1316, %v1337
      %v1340 = vunpack.c.l.s4 1966171168
      %v1341 = vunpack.c.0.s8 %v1340
      %v1342 = vlaneseq
      %v1343 = vshrl.u32 %v1342, 7
      %v1344 = vsub.s32 %v1341, %v1343
      %v1345 = vrot.slane %v1317, %v1344
      %v1346 = vcombine.low %v1324, %v1331
      %v1347 = vcombine.low %v1338, %v1345
      %v1349 = vunpack.c.l.s4 1966171168
      %v1350 = vunpack.c.0.s8 %v1349
      %v1351 = vlaneseq
      %v1352 = vshrl.u32 %v1351, 7
      %v1353 = vsub.s32 %v1350, %v1352
      %v1354 = vrot.slane %v1346, %v1353
      %v1356 = vunpack.c.l.s4 1966171168
      %v1357 = vunpack.c.0.s8 %v1356
      %v1358 = vlaneseq
      %v1359 = vshrl.u32 %v1358, 7
      %v1360 = vsub.s32 %v1357, %v1359
      %v1361 = vrot.slane %v1347, %v1360
      %v1362 = vcombine.low %v1354, %v1361
      %v1363 = vcombine.low %v841, %v824
      %v1364 = vcombine.low %v838, %v840
      %v1365 = vcombine.low %v842, %v856
      %v1366 = vcombine.low %v880, %v894
      %v1368 = vunpack.c.l.s4 1966171168
      %v1369 = vunpack.c.0.s8 %v1368
      %v1370 = vlaneseq
      %v1371 = vshrl.u32 %v1370, 7
      %v1372 = vsub.s32 %v1369, %v1371
      %v1373 = vrot.slane %v1363, %v1372
      %v1375 = vunpack.c.l.s4 1966171168
      %v1376 = vunpack.c.0.s8 %v1375
      %v1377 = vlaneseq
      %v1378 = vshrl.u32 %v1377, 7
      %v1379 = vsub.s32 %v1376, %v1378
      %v1380 = vrot.slane %v1364, %v1379
      %v1382 = vunpack.c.l.s4 1966171168
      %v1383 = vunpack.c.0.s8 %v1382
      %v1384 = vlaneseq
      %v1385 = vshrl.u32 %v1384, 7
      %v1386 = vsub.s32 %v1383, %v1385
      %v1387 = vrot.slane %v1365, %v1386
      %v1389 = vunpack.c.l.s4 1966171168
      %v1390 = vunpack.c.0.s8 %v1389
      %v1391 = vlaneseq
      %v1392 = vshrl.u32 %v1391, 7
      %v1393 = vsub.s32 %v1390, %v1392
      %v1394 = vrot.slane %v1366, %v1393
      %v1395 = vcombine.low %v1373, %v1380
      %v1396 = vcombine.low %v1387, %v1394
      %v1398 = vunpack.c.l.s4 1966171168
      %v1399 = vunpack.c.0.s8 %v1398
      %v1400 = vlaneseq
      %v1401 = vshrl.u32 %v1400, 7
      %v1402 = vsub.s32 %v1399, %v1401
      %v1403 = vrot.slane %v1395, %v1402
      %v1405 = vunpack.c.l.s4 1966171168
      %v1406 = vunpack.c.0.s8 %v1405
      %v1407 = vlaneseq
      %v1408 = vshrl.u32 %v1407, 7
      %v1409 = vsub.s32 %v1406, %v1408
      %v1410 = vrot.slane %v1396, %v1409
      %v1411 = vcombine.low %v1403, %v1410
      %v1412 = vcombine.low %v902, %v904
      %v1413 = vcombine.low %v887, %v901
      %v1414 = vcombine.low %v903, %v905
      %v1415 = vcombine.low %v919, %v943
      %v1417 = vunpack.c.l.s4 1966171168
      %v1418 = vunpack.c.0.s8 %v1417
      %v1419 = vlaneseq
      %v1420 = vshrl.u32 %v1419, 7
      %v1421 = vsub.s32 %v1418, %v1420
      %v1422 = vrot.slane %v1412, %v1421
      %v1424 = vunpack.c.l.s4 1966171168
      %v1425 = vunpack.c.0.s8 %v1424
      %v1426 = vlaneseq
      %v1427 = vshrl.u32 %v1426, 7
      %v1428 = vsub.s32 %v1425, %v1427
      %v1429 = vrot.slane %v1413, %v1428
      %v1431 = vunpack.c.l.s4 1966171168
      %v1432 = vunpack.c.0.s8 %v1431
      %v1433 = vlaneseq
      %v1434 = vshrl.u32 %v1433, 7
      %v1435 = vsub.s32 %v1432, %v1434
      %v1436 = vrot.slane %v1414, %v1435
      %v1438 = vunpack.c.l.s4 1966171168
      %v1439 = vunpack.c.0.s8 %v1438
      %v1440 = vlaneseq
      %v1441 = vshrl.u32 %v1440, 7
      %v1442 = vsub.s32 %v1439, %v1441
      %v1443 = vrot.slane %v1415, %v1442
      %v1444 = vcombine.low %v1422, %v1429
      %v1445 = vcombine.low %v1436, %v1443
      %v1447 = vunpack.c.l.s4 1966171168
      %v1448 = vunpack.c.0.s8 %v1447
      %v1449 = vlaneseq
      %v1450 = vshrl.u32 %v1449, 7
      %v1451 = vsub.s32 %v1448, %v1450
      %v1452 = vrot.slane %v1444, %v1451
      %v1454 = vunpack.c.l.s4 1966171168
      %v1455 = vunpack.c.0.s8 %v1454
      %v1456 = vlaneseq
      %v1457 = vshrl.u32 %v1456, 7
      %v1458 = vsub.s32 %v1455, %v1457
      %v1459 = vrot.slane %v1445, %v1458
      %v1460 = vcombine.low %v1452, %v1459
      %v1461 = vcombine.low %v957, %v965
      %v1462 = vcombine.low %v967, %v950
      %v1463 = vcombine.low %v964, %v966
      %v1464 = vcombine.low %v968, %v982
      %v1466 = vunpack.c.l.s4 1966171168
      %v1467 = vunpack.c.0.s8 %v1466
      %v1468 = vlaneseq
      %v1469 = vshrl.u32 %v1468, 7
      %v1470 = vsub.s32 %v1467, %v1469
      %v1471 = vrot.slane %v1461, %v1470
      %v1473 = vunpack.c.l.s4 1966171168
      %v1474 = vunpack.c.0.s8 %v1473
      %v1475 = vlaneseq
      %v1476 = vshrl.u32 %v1475, 7
      %v1477 = vsub.s32 %v1474, %v1476
      %v1478 = vrot.slane %v1462, %v1477
      %v1480 = vunpack.c.l.s4 1966171168
      %v1481 = vunpack.c.0.s8 %v1480
      %v1482 = vlaneseq
      %v1483 = vshrl.u32 %v1482, 7
      %v1484 = vsub.s32 %v1481, %v1483
      %v1485 = vrot.slane %v1463, %v1484
      %v1487 = vunpack.c.l.s4 1966171168
      %v1488 = vunpack.c.0.s8 %v1487
      %v1489 = vlaneseq
      %v1490 = vshrl.u32 %v1489, 7
      %v1491 = vsub.s32 %v1488, %v1490
      %v1492 = vrot.slane %v1464, %v1491
      %v1493 = vcombine.low %v1471, %v1478
      %v1494 = vcombine.low %v1485, %v1492
      %v1496 = vunpack.c.l.s4 1966171168
      %v1497 = vunpack.c.0.s8 %v1496
      %v1498 = vlaneseq
      %v1499 = vshrl.u32 %v1498, 7
      %v1500 = vsub.s32 %v1497, %v1499
      %v1501 = vrot.slane %v1493, %v1500
      %v1503 = vunpack.c.l.s4 1966171168
      %v1504 = vunpack.c.0.s8 %v1503
      %v1505 = vlaneseq
      %v1506 = vshrl.u32 %v1505, 7
      %v1507 = vsub.s32 %v1504, %v1506
      %v1508 = vrot.slane %v1494, %v1507
      %v1509 = vcombine.low %v1501, %v1508
      %v1510 = vcombine.low %v1006, %v1020
      %v1511 = vcombine.low %v1028, %v1030
      %v1512 = vcombine.low %v1013, %v1027
      %v1513 = vcombine.low %v1029, %v1031
      %v1515 = vunpack.c.l.s4 1966171168
      %v1516 = vunpack.c.0.s8 %v1515
      %v1517 = vlaneseq
      %v1518 = vshrl.u32 %v1517, 7
      %v1519 = vsub.s32 %v1516, %v1518
      %v1520 = vrot.slane %v1510, %v1519
      %v1522 = vunpack.c.l.s4 1966171168
      %v1523 = vunpack.c.0.s8 %v1522
      %v1524 = vlaneseq
      %v1525 = vshrl.u32 %v1524, 7
      %v1526 = vsub.s32 %v1523, %v1525
      %v1527 = vrot.slane %v1511, %v1526
      %v1529 = vunpack.c.l.s4 1966171168
      %v1530 = vunpack.c.0.s8 %v1529
      %v1531 = vlaneseq
      %v1532 = vshrl.u32 %v1531, 7
      %v1533 = vsub.s32 %v1530, %v1532
      %v1534 = vrot.slane %v1512, %v1533
      %v1536 = vunpack.c.l.s4 1966171168
      %v1537 = vunpack.c.0.s8 %v1536
      %v1538 = vlaneseq
      %v1539 = vshrl.u32 %v1538, 7
      %v1540 = vsub.s32 %v1537, %v1539
      %v1541 = vrot.slane %v1513, %v1540
      %v1542 = vcombine.low %v1520, %v1527
      %v1543 = vcombine.low %v1534, %v1541
      %v1545 = vunpack.c.l.s4 1966171168
      %v1546 = vunpack.c.0.s8 %v1545
      %v1547 = vlaneseq
      %v1548 = vshrl.u32 %v1547, 7
      %v1549 = vsub.s32 %v1546, %v1548
      %v1550 = vrot.slane %v1542, %v1549
      %v1552 = vunpack.c.l.s4 1966171168
      %v1553 = vunpack.c.0.s8 %v1552
      %v1554 = vlaneseq
      %v1555 = vshrl.u32 %v1554, 7
      %v1556 = vsub.s32 %v1553, %v1555
      %v1557 = vrot.slane %v1543, %v1556
      %v1558 = vcombine.low %v1550, %v1557
      %v1560 = vunpack.c.l.s4 1966171168
      %v1561 = vunpack.c.0.s8 %v1560
      %v1562 = vlaneseq
      %v1563 = vshrl.u32 %v1562, 7
      %v1564 = vsub.s32 %v1561, %v1563
      %v1565 = vrot.slane %v1045, %v1564
      %v1567 = vunpack.c.l.s4 1966171168
      %v1568 = vunpack.c.0.s8 %v1567
      %v1569 = vlaneseq
      %v1570 = vshrl.u32 %v1569, 7
      %v1571 = vsub.s32 %v1568, %v1570
      %v1572 = vrot.slane %v1565, %v1571
      %1584 = vmatprep.subr.mxu0 0.0
      %1585 = vmatpush1.msra.mxu0 %v1061
      %1586 = vmatprep.subr.mxu0 0.0
      %1587 = vmatpush1.msra.mxu0 %v1060
      %1588 = vmatprep.subr.mxu0 0.0
      %1589 = vmatpush1.msra.mxu0 %v1059
      %1590 = vmatprep.subr.mxu0 0.0
      %1591 = vmatpush1.msra.mxu0 %v1058
      %1592 = vmatprep.subr.mxu0 0.0
      %1593 = vmatpush1.msra.mxu0 %v1057
      %1594 = vmatprep.subr.mxu0 0.0
      %1595 = vmatpush1.msra.mxu0 %v1056
      %1596 = vmatprep.subr.mxu0 0.0
      %1597 = vmatpush1.msra.mxu0 %v1055
      %1598 = vmatprep.subr.mxu0 0.0
      %1599 = vmatpush1.msra.mxu0 %v1054
      %1600 = vmatprep.subr.mxu0 0.0
      %1601 = vmatpush1.msra.mxu0 %v1053
      %1602 = vmatprep.subr.mxu0 0.0
      %1603 = vmatpush1.msra.mxu0 %v1052
      %1604 = vmatprep.subr.mxu0 0.0
      %1605 = vmatpush1.msra.mxu0 %v1051
      %1606 = vmatprep.subr.mxu0 0.0
      %1607 = vmatpush1.msra.mxu0 %v1050
      %1608 = vmatprep.subr.mxu0 0.0
      %1609 = vmatpush1.msra.mxu0 %v1049
      %1610 = vmatprep.subr.mxu0 0.0
      %1611 = vmatpush1.msra.mxu0 %v1048
      %1612 = vmatprep.subr.mxu0 0.0
      %1613 = vmatpush1.msra.mxu0 %v1047
      %1614 = vmatprep.subr.mxu0 0.0
      %1615 = vmatpush1.msra.mxu0 %v1046
      %1616 = vmatprep.subr.mxu0 0.0
      %1617 = vmatpush2.msra.mxu0 0.0
      %1618 = vmatprep.subr.mxu0 0.0
      %1619 = vmatpush2.msra.mxu0 0.0
      %1620 = vmatprep.subr.mxu0 0.0
      %1621 = vmatpush2.msra.mxu0 0.0
      %1622 = vmatprep.subr.mxu0 0.0
      %1623 = vmatpush2.msra.mxu0 0.0
      %1624 = vmatprep.subr.mxu0 0.0
      %1625 = vmatpush2.msra.mxu0 0.0
      %1626 = vmatprep.subr.mxu0 0.0
      %1627 = vmatpush2.msra.mxu0 0.0
      %1628 = vmatprep.subr.mxu0 0.0
      %1629 = vmatpush2.msra.mxu0 0.0
      %1630 = vmatprep.subr.mxu0 0.0
      %1631 = vmatpush2.msra.mxu0 0.0
      %1632 = vmatprep.subr.mxu0 0.0
      %1633 = vmatpush2.msra.mxu0 0.0
      %1634 = vmatprep.subr.mxu0 0.0
      %1635 = vmatpush2.msra.mxu0 0.0
      %1636 = vmatprep.subr.mxu0 0.0
      %1637 = vmatpush2.msra.mxu0 0.0
      %1638 = vmatprep.subr.mxu0 0.0
      %1639 = vmatpush2.msra.mxu0 0.0
      %1640 = vmatprep.subr.mxu0 0.0
      %1641 = vmatpush2.msra.mxu0 0.0
      %1642 = vmatprep.subr.mxu0 0.0
      %1643 = vmatpush2.msra.mxu0 0.0
      %1644 = vmatprep.subr.mxu0 0.0
      %1645 = vmatpush2.msra.mxu0 0.0
      %1646 = vmatprep.subr.mxu0 0.0
      %1647 = vmatpush2.msra.mxu0 0.0
      %1648 = vmatprep.mubr.f32.mxu0 0.0
      %1649 = vmatmul.mubr.f32.gmra.mxu0 %v1117
      %v1650 = vpop.f32.mrf.mxu0
      %v1651 = vadd.f32 %v1067, %v1650
      %v1652 = vpop.f32.mrf.mxu0
      %1653 = vmatprep.mubr.f32.mxu0 0.0
      %1654 = vmatmul.mubr.f32.gmra.mxu0 %v1166
      %v1655 = vpop.f32.mrf.mxu0
      %v1656 = vadd.f32 %v1067, %v1655
      %v1657 = vpop.f32.mrf.mxu0
      %1658 = vmatprep.mubr.f32.mxu0 0.0
      %1659 = vmatmul.mubr.f32.gmra.mxu0 %v1215
      %v1660 = vpop.f32.mrf.mxu0
      %v1661 = vadd.f32 %v1067, %v1660
      %v1662 = vpop.f32.mrf.mxu0
      %1663 = vmatprep.mubr.f32.mxu0 0.0
      %1664 = vmatmul.mubr.f32.gmra.mxu0 %v1264
      %v1665 = vpop.f32.mrf.mxu0
      %v1666 = vadd.f32 %v1067, %v1665
      %v1667 = vpop.f32.mrf.mxu0
      %1668 = vmatprep.mubr.f32.mxu0 0.0
      %1669 = vmatmul.mubr.f32.gmra.mxu0 %v1313
      %v1670 = vpop.f32.mrf.mxu0
      %v1671 = vadd.f32 %v1067, %v1670
      %v1672 = vpop.f32.mrf.mxu0
      %1673 = vmatprep.mubr.f32.mxu0 0.0
      %1674 = vmatmul.mubr.f32.gmra.mxu0 %v1362
      %v1675 = vpop.f32.mrf.mxu0
      %v1676 = vadd.f32 %v1067, %v1675
      %v1677 = vpop.f32.mrf.mxu0
      %1678 = vmatprep.mubr.f32.mxu0 0.0
      %1679 = vmatmul.mubr.f32.gmra.mxu0 %v1411
      %v1680 = vpop.f32.mrf.mxu0
      %v1681 = vadd.f32 %v1067, %v1680
      %v1682 = vpop.f32.mrf.mxu0
      %1683 = vmatprep.mubr.f32.mxu0 0.0
      %1684 = vmatmul.mubr.f32.gmra.mxu0 %v1460
      %v1685 = vpop.f32.mrf.mxu0
      %v1686 = vadd.f32 %v1067, %v1685
      %v1687 = vpop.f32.mrf.mxu0
      %1688 = vmatprep.mubr.f32.mxu0 0.0
      %1689 = vmatmul.mubr.f32.gmra.mxu0 %v1509
      %v1690 = vpop.f32.mrf.mxu0
      %v1691 = vadd.f32 %v1067, %v1690
      %v1692 = vpop.f32.mrf.mxu0
      %1693 = vmatprep.mubr.f32.mxu0 0.0
      %1694 = vmatmul.mubr.f32.gmra.mxu0 %v1558
      %v1695 = vpop.f32.mrf.mxu0
      %v1696 = vadd.f32 %v1067, %v1695
      %v1697 = vpop.f32.mrf.mxu0
      %1698 = vmatprep.mubr.f32.mxu0 0.0
      %1699 = vmatmul.mubr.f32.gmra.mxu0 %v1572
      %v1700 = vpop.f32.mrf.mxu0
      %v1701 = vadd.f32 %v1067, %v1700
      %v1702 = vpop.f32.mrf.mxu0
      %1703 = vdwg.mxu0
      %v1704 = vmin.f32 %v1651, 0.0
      %v1705 = vmin.f32 %v1656, 0.0
      %v1706 = vmin.f32 %v1661, 0.0
      %v1707 = vmin.f32 %v1666, 0.0
      %v1708 = vmin.f32 %v1671, 0.0
      %v1709 = vmin.f32 %v1676, 0.0
      %v1710 = vmin.f32 %v1681, 0.0
      %v1711 = vmin.f32 %v1686, 0.0
      %v1712 = vmin.f32 %v1691, 0.0
      %v1713 = vmin.f32 %v1696, 0.0
      %v1714 = vmin.f32 %v1701, 0.0
      %v1715 = vmul.f32 %v1704, 0.044715
      %v1716 = vmul.f32 %v1705, 0.044715
      %v1717 = vmul.f32 %v1706, 0.044715
      %v1718 = vmul.f32 %v1707, 0.044715
      %v1719 = vmul.f32 %v1708, 0.044715
      %v1720 = vmul.f32 %v1709, 0.044715
      %v1721 = vmul.f32 %v1710, 0.044715
      %v1722 = vmul.f32 %v1711, 0.044715
      %v1723 = vmul.f32 %v1712, 0.044715
      %v1724 = vmul.f32 %v1713, 0.044715
      %v1725 = vmul.f32 %v1714, 0.044715
      %v1726 = vmul.f32 %v1715, %v1704
      %v1727 = vmul.f32 %v1716, %v1705
      %v1728 = vmul.f32 %v1717, %v1706
      %v1729 = vmul.f32 %v1718, %v1707
      %v1730 = vmul.f32 %v1719, %v1708
      %v1731 = vmul.f32 %v1720, %v1709
      %v1732 = vmul.f32 %v1721, %v1710
      %v1733 = vmul.f32 %v1722, %v1711
      %v1734 = vmul.f32 %v1723, %v1712
      %v1735 = vmul.f32 %v1724, %v1713
      %v1736 = vmul.f32 %v1725, %v1714
      %v1737 = vmul.f32 %v1726, %v1704
      %v1738 = vmul.f32 %v1727, %v1705
      %v1739 = vmul.f32 %v1728, %v1706
      %v1740 = vmul.f32 %v1729, %v1707
      %v1741 = vmul.f32 %v1730, %v1708
      %v1742 = vmul.f32 %v1731, %v1709
      %v1743 = vmul.f32 %v1732, %v1710
      %v1744 = vmul.f32 %v1733, %v1711
      %v1745 = vmul.f32 %v1734, %v1712
      %v1746 = vmul.f32 %v1735, %v1713
      %v1747 = vmul.f32 %v1736, %v1714
      %v1748 = vadd.f32 %v1704, %v1737
      %v1749 = vadd.f32 %v1705, %v1738
      %v1750 = vadd.f32 %v1706, %v1739
      %v1751 = vadd.f32 %v1707, %v1740
      %v1752 = vadd.f32 %v1708, %v1741
      %v1753 = vadd.f32 %v1709, %v1742
      %v1754 = vadd.f32 %v1710, %v1743
      %v1755 = vadd.f32 %v1711, %v1744
      %v1756 = vadd.f32 %v1712, %v1745
      %v1757 = vadd.f32 %v1713, %v1746
      %v1758 = vadd.f32 %v1714, %v1747
      %v1759 = vmul.f32 %v1748, 0.7978846
      %v1760 = vmul.f32 %v1749, 0.7978846
      %v1761 = vmul.f32 %v1750, 0.7978846
      %v1762 = vmul.f32 %v1751, 0.7978846
      %v1763 = vmul.f32 %v1752, 0.7978846
      %v1764 = vmul.f32 %v1753, 0.7978846
      %v1765 = vmul.f32 %v1754, 0.7978846
      %v1766 = vmul.f32 %v1755, 0.7978846
      %v1767 = vmul.f32 %v1756, 0.7978846
      %v1768 = vmul.f32 %v1757, 0.7978846
      %v1769 = vmul.f32 %v1758, 0.7978846
      %v1770 = vtanh.pop %v1759
      %v1771 = vtanh.pop %v1760
      %v1772 = vtanh.pop %v1761
      %v1773 = vtanh.pop %v1762
      %v1774 = vtanh.pop %v1763
      %v1775 = vtanh.pop %v1764
      %v1776 = vtanh.pop %v1765
      %v1777 = vtanh.pop %v1766
      %v1778 = vtanh.pop %v1767
      %v1779 = vtanh.pop %v1768
      %v1780 = vtanh.pop %v1769
      %v1781 = vadd.f32 %v1770, 1.0
      %v1782 = vadd.f32 %v1771, 1.0
      %v1783 = vadd.f32 %v1772, 1.0
      %v1784 = vadd.f32 %v1773, 1.0
      %v1785 = vadd.f32 %v1774, 1.0
      %v1786 = vadd.f32 %v1775, 1.0
      %v1787 = vadd.f32 %v1776, 1.0
      %v1788 = vadd.f32 %v1777, 1.0
      %v1789 = vadd.f32 %v1778, 1.0
      %v1790 = vadd.f32 %v1779, 1.0
      %v1791 = vadd.f32 %v1780, 1.0
      %v1792 = vmul.f32 %v1704, %v1781
      %v1793 = vmul.f32 %v1705, %v1782
      %v1794 = vmul.f32 %v1706, %v1783
      %v1795 = vmul.f32 %v1707, %v1784
      %v1796 = vmul.f32 %v1708, %v1785
      %v1797 = vmul.f32 %v1709, %v1786
      %v1798 = vmul.f32 %v1710, %v1787
      %v1799 = vmul.f32 %v1711, %v1788
      %v1800 = vmul.f32 %v1712, %v1789
      %v1801 = vmul.f32 %v1713, %v1790
      %v1802 = vmul.f32 %v1714, %v1791
      %1803 = vst.msk [vmem:[%s170] sm:$0xff] %vm423, %v1792
      %1804 = vst.msk [vmem:[%s170 + $0x8] sm:$0xff] %vm423, %v1793
      %1805 = vst.msk [vmem:[%s170 + $0x10] sm:$0xff] %vm423, %v1794
      %1806 = vst.msk [vmem:[%s170 + $0x18] sm:$0xff] %vm423, %v1795
      %1807 = vst.msk [vmem:[%s170 + $0x20] sm:$0xff] %vm423, %v1796
      %1808 = vst.msk [vmem:[%s170 + $0x28] sm:$0xff] %vm423, %v1797
      %1809 = vst.msk [vmem:[%s170 + $0x30] sm:$0xff] %vm423, %v1798
      %1810 = vst.msk [vmem:[%s170 + $0x38] sm:$0xff] %vm423, %v1799
      %1811 = vst.msk [vmem:[%s170 + $0x40] sm:$0xff] %vm423, %v1800
      %1812 = vst.msk [vmem:[%s170 + $0x48] sm:$0xff] %vm423, %v1801
      %vm1813 = vcmask 516096
      %1814 = vst.msk [vmem:[%s170 + $0x50] sm:$0x1] %vm1813, %v1802
      %p1815 = scmp.lt.s32.totalorder %s14, 1
      %s1816 = scalar_select %p1815, %s14, 1
      %s1817 = smul.addr %s1816, 11
      %s1818 = smul.addr %s1817, 8
      %s1819 = scalar_lea.vmem %s3, %s1818
      // Predicated region
      $region33: #{tpu_custom_call.1} parent=31 // pred_check
        %p1820 = pneg %p100
      $region34: #{tpu_custom_call.1} parent=31 // pred_check_branch
        %1822 = sbr.rel (%p1820) target = $region36
      $region35: #{tpu_custom_call.1} parent=31 // pred_region
        _
      $region36: #{tpu_custom_call.1} parent=31 // pred_fallthru
        _
    $region32: #{tpu_custom_call.1} parent=5 // pred_fallthru
      _
    %p1823 = scmp.le.s32.totalorder 2, %s9
    // Predicated region
    $region37: #{tpu_custom_call.1} parent=5 // pred_check
      %p1824 = pneg %p1823
    $region38: #{tpu_custom_call.1} parent=5 // pred_check_branch
      %1826 = sbr.rel (%p1824) target = $region40
    $region39: #{tpu_custom_call.1} parent=5 // pred_region
      %s1827 = ssub.s32 %s9, 2
      // Predicated region
      $region41: #{tpu_custom_call.1} parent=39 // pred_check
        %p1828 = pneg %p106
      $region42: #{tpu_custom_call.1} parent=39 // pred_check_branch
        %1830 = sbr.rel (%p1828) target = $region44
      $region43: #{tpu_custom_call.1} parent=39 // pred_region
        %p1831 = scmp.lt.s32.totalorder %s15, 1
        %s1832 = scalar_select %p1831, %s15, 1
        %s1833 = smul.addr %s1832, 11
        %s1834 = smul.addr %s1833, 8
        %s1835 = scalar_lea.vmem %s3, %s1834
      $region44: #{tpu_custom_call.1} parent=39 // pred_fallthru
        _
    $region40: #{tpu_custom_call.1} parent=5 // pred_fallthru
      _
  $region6: #{tpu_custom_call.1} parent=0 // loop_footer
    %s13 = sadd.s32 1, %s9
  $region7: #{tpu_custom_call.1} parent=0 // loop_footer_branch
    %8 = sbr.rel target = $region3
  $region8: #{tpu_custom_call.1} parent=0 // loop_exit
    _

</llo_original>
